<compile_context>
chip_gen: v7x
topology: tpu7x:2x2x1
jax: 0.10.0
libtpu: 0.0.40
codegen_flags: <defaults>
</compile_context>

<pallas_src>
import numpy as np
import jax
import jax.numpy as jnp
from jax import lax
from jax.experimental import pallas as pl
from jax.experimental.pallas import tpu as pltpu

# ----------------------------- config ---------------------------------------
N = 4          # batch size
T = 8          # max caption length
FC_FEAT = 32   # opt.fc_feat_size
EMBED = 32     # opt.vse_embed_size  (GRU hidden size, joint embedding dim)
ENC = 16       # opt.input_encoding_size (word embedding dim)
VOCAB = 20     # opt.vocab_size  -> embedding table rows = VOCAB + 2
MARGIN = 0.2   # opt.vse_margin

VMEM = pl.BlockSpec(memory_space=pltpu.MemorySpace.VMEM)
F32 = jnp.float32
BF16 = jnp.bfloat16


def _bdot(a, b):
    """bf16-input, f32-accumulate matmul (single-pass MXU on v5e/v6e/v7x)."""
    return jnp.dot(a.astype(BF16), b.astype(BF16), preferred_element_type=F32)


# --------------------------- fused Pallas kernel -----------------------------
def _vsefc_fused_kernel(fc_ref, seq_ref, len_ref,
                        wfc_ref, bfc_ref,
                        gi_tbl_ref, whh_ref, bhh_ref,
                        loss_ref):
    nb = fc_ref.shape[0]       # batch
    hid = whh_ref.shape[0]     # hidden / joint embedding size
    tn = seq_ref.shape[0]      # T * N (time-major rows, row = t*N + b)
    v2 = gi_tbl_ref.shape[0]   # vocab + 2
    tsteps = tn // nb          # compile-time constant

    # ---- EncoderImage: l2norm(fc @ W + b) ----------------------------------
    feat = jnp.dot(fc_ref[...].astype(BF16), wfc_ref[...],
                   preferred_element_type=F32) + bfc_ref[...]
    im_norm = jnp.sqrt(jnp.sum(feat * feat, axis=1, keepdims=True)) + 1e-7
    im = feat * pl.reciprocal(im_norm, approx=True)                   # (N, H)

    # ---- EncoderText --------------------------------------------------------
    # Per-token gate preactivations: exact one-hot row selection out of the
    # precomputed (V2, 3H) table (kept f32 so the selection is exact and
    # matches the reference's per-token bf16mm(x, w_ih.T)+b_ih values).
    eq = seq_ref[...] == lax.broadcasted_iota(jnp.int32, (tn, v2), 1)
    onehot = jnp.where(eq, 1.0, 0.0)                                  # (T*N, V2) f32
    gi_all = jnp.dot(onehot, gi_tbl_ref[...],
                     preferred_element_type=F32)                      # (T*N, 3H)

    whh = whh_ref[...]                                                # (H, 3H) bf16
    bhh = jnp.broadcast_to(bhh_ref[...], (nb, 3 * hid))               # (N, 3H)
    lengths = len_ref[...]                                            # (N, 1) i32

    h = jnp.zeros((nb, hid), F32)
    for t in range(tsteps):        # static unroll: T is a compile-time constant
        r0 = t * nb
        gi = gi_all[r0:r0 + nb, :]                                    # (N, 3H)
        # ONE hidden-to-hidden MXU op per step (96-lane RHS, single column pass)
        gh = jnp.dot(h.astype(BF16), whh, preferred_element_type=F32) + bhh
        # PyTorch GRU gate order: r | z | n (static 32-wide lane slices)
        pre_r = gi[:, :hid] + gh[:, :hid]
        pre_z = gi[:, hid:2 * hid] + gh[:, hid:2 * hid]
        # sigmoid(x) == 0.5*(tanh(0.5*x)+1): one EUP op instead of exp+rcp
        r = 0.5 * (jnp.tanh(0.5 * pre_r) + 1.0)
        z = 0.5 * (jnp.tanh(0.5 * pre_z) + 1.0)
        n = jnp.tanh(gi[:, 2 * hid:] + r * gh[:, 2 * hid:])
        h_new = (1.0 - z) * n + z * h
        # freeze h once past the sequence length (== gather output at len-1)
        h = jnp.where(t < lengths, h_new, h)

    cap_norm = jnp.sqrt(jnp.sum(h * h, axis=1, keepdims=True)) + 1e-7
    cap = h * pl.reciprocal(cap_norm, approx=True)                    # (N, H)

    # ---- ContrastiveLoss (cosine, max_violation=False, sum over batch) -----
    scores = lax.dot_general(im.astype(BF16), cap.astype(BF16),
                             (((1,), (1,)), ((), ())),
                             preferred_element_type=F32)              # im @ cap.T
    eye = (lax.broadcasted_iota(jnp.int32, (nb, nb), 0) ==
           lax.broadcasted_iota(jnp.int32, (nb, nb), 1))
    diag_col = jnp.sum(jnp.where(eye, scores, 0.0), axis=1, keepdims=True)  # s_ii
    diag_row = jnp.sum(jnp.where(eye, scores, 0.0), axis=0, keepdims=True)  # s_jj
    cost_s = jnp.where(eye, 0.0, jnp.maximum(MARGIN + scores - diag_col, 0.0))
    cost_im = jnp.where(eye, 0.0, jnp.maximum(MARGIN + scores - diag_row, 0.0))
    # sum(mean(cost_s, 1)) + sum(mean(cost_im, 0)) == (sum_s + sum_im) / N
    # (1,1) VMEM output -> single masked vst; accepted (cheaper than more ops).
    loss_ref[...] = (jnp.sum(cost_s, keepdims=True) +
                     jnp.sum(cost_im, keepdims=True)) * (1.0 / nb)


# ------------------------------ wrapper --------------------------------------
def pack_params(params):
    """One-time parameter packing (run OUTSIDE jit; params are static)."""
    hid = EMBED
    w_ih_t = jnp.transpose(params["w_ih"])            # (ENC, 3H)
    w_hh_t = jnp.transpose(params["w_hh"])            # (H, 3H)
    # per-token input-gate preactivation table; b_ih fold is exact because
    # every one-hot row sums to exactly 1
    gi_table = (jnp.dot(params["emb"].astype(BF16), w_ih_t.astype(BF16),
                        preferred_element_type=F32)
                + params["b_ih"].reshape(1, 3 * hid))                 # (V2, 3H) f32
    return {
        "w_fc": params["w_fc"].astype(BF16),                          # (FC, H) bf16
        "b_fc": params["b_fc"].reshape(1, hid).astype(F32),           # (1, H)
        "gi_table": gi_table,                                         # (V2, 3H)
        "whh": w_hh_t.astype(BF16),                                   # (H, 3H) bf16
        "bhh": params["b_hh"].reshape(1, 3 * hid).astype(F32),        # (1, 3H)
    }


@jax.jit
def vsefc_forward(fc_feats, seq, masks, packed):
    # (att_feats from the original signature is unused for loss_type='contrastive')
    nb, tsteps = seq.shape
    lengths = jnp.sum((masks > 0).astype(jnp.int32), axis=1).reshape(nb, 1)
    # time-major flattened indices: row = t*N + b  (only int32 enters the kernel)
    seq_tm = jnp.transpose(seq).reshape(tsteps * nb, 1).astype(jnp.int32)

    out = pl.pallas_call(
        _vsefc_fused_kernel,
        out_shape=jax.ShapeDtypeStruct((1, 1), jnp.float32),
        in_specs=[VMEM] * 8,
        out_specs=VMEM,
    )(fc_feats, seq_tm, lengths,
      packed["w_fc"], packed["b_fc"], packed["gi_table"],
      packed["whh"], packed["bhh"])
    return out[0, 0]


# --------------------------- pure-JAX reference -------------------------------
def _reference(fc_feats, seq, masks, params):
    H = EMBED
    feat = _bdot(fc_feats, params["w_fc"]) + params["b_fc"]
    im = feat / (jnp.linalg.norm(feat, axis=1, keepdims=True) + 1e-7)

    x = params["emb"][seq]                              # (N, T, E)
    w_ih_t, w_hh_t = params["w_ih"].T, params["w_hh"].T

    def step(h, inp):
        x_t, m_t = inp
        gi = _bdot(x_t, w_ih_t) + params["b_ih"]
        gh = _bdot(h, w_hh_t) + params["b_hh"]
        r = jax.nn.sigmoid(gi[:, :H] + gh[:, :H])
        z = jax.nn.sigmoid(gi[:, H:2 * H] + gh[:, H:2 * H])
        n = jnp.tanh(gi[:, 2 * H:] + r * gh[:, 2 * H:])
        h_new = (1.0 - z) * n + z * h
        h = m_t[:, None] * h_new + (1.0 - m_t[:, None]) * h
        return h, None

    h0 = jnp.zeros((seq.shape[0], H), jnp.float32)
    h, _ = lax.scan(step, h0, (jnp.transpose(x, (1, 0, 2)), masks.T))
    cap = h / (jnp.linalg.norm(h, axis=1, keepdims=True) + 1e-7)

    scores = _bdot(im, cap.T)
    diag = jnp.diag(scores)[:, None]
    cost_s = jnp.maximum(MARGIN + scores - diag, 0.0)
    cost_im = jnp.maximum(MARGIN + scores - diag.T, 0.0)
    eye = jnp.eye(scores.shape[0], dtype=bool)
    cost_s = jnp.where(eye, 0.0, cost_s)
    cost_im = jnp.where(eye, 0.0, cost_im)
    return jnp.sum(jnp.mean(cost_s, axis=1)) + jnp.sum(jnp.mean(cost_im, axis=0))


# --------------------------------- main ---------------------------------------
if __name__ == "__main__":
    key = jax.random.PRNGKey(0)
    ks = jax.random.split(key, 8)

    # deterministic parameter init mirroring the module's __init__
    r = float(np.sqrt(6.0) / np.sqrt(FC_FEAT + EMBED))
    rg = float(1.0 / np.sqrt(EMBED))
    params = {
        "w_fc": jax.random.uniform(ks[0], (FC_FEAT, EMBED), jnp.float32, -r, r),
        "b_fc": jnp.zeros((EMBED,), jnp.float32),
        "emb": jax.random.uniform(ks[1], (VOCAB + 2, ENC), jnp.float32, -0.1, 0.1),
        "w_ih": jax.random.uniform(ks[2], (3 * EMBED, ENC), jnp.float32, -rg, rg),
        "w_hh": jax.random.uniform(ks[3], (3 * EMBED, EMBED), jnp.float32, -rg, rg),
        "b_ih": jax.random.uniform(ks[4], (3 * EMBED,), jnp.float32, -rg, rg),
        "b_hh": jax.random.uniform(ks[5], (3 * EMBED,), jnp.float32, -rg, rg),
    }

    # deterministic example inputs
    fc_feats = jax.random.normal(ks[6], (N, FC_FEAT), jnp.float32)
    seq = jax.random.randint(ks[7], (N, T), 0, VOCAB + 2, dtype=jnp.int32)
    lengths = jnp.array([8, 5, 6, 3], dtype=jnp.int32)
    masks = (jnp.arange(T)[None, :] < lengths[:, None]).astype(jnp.float32)

    packed = pack_params(params)        # one-time packing, outside jit

    loss = jax.block_until_ready(vsefc_forward(fc_feats, seq, masks, packed))
    ref = jax.block_until_ready(_reference(fc_feats, seq, masks, params))

    # kernel and reference share the bf16-input / f32-accumulate convention;
    # 3e-3 additionally covers the approx (EUP) reciprocal (~2^-12 rel err)
    # used for the two l2-norms and transcendental implementation differences.
    np.testing.assert_allclose(np.asarray(loss), np.asarray(ref),
                               rtol=3e-3, atol=3e-3)
    print("KERNEL_OK")
</pallas_src>

<mosaic_0001>
module attributes {stable_mosaic.version = 11 : i64} {
  func.func @_vsefc_fused_kernel(%arg0: memref<4x32xf32, #tpu.memory_space<vmem>>, %arg1: memref<32x1xi32, #tpu.memory_space<vmem>>, %arg2: memref<4x1xi32, #tpu.memory_space<vmem>>, %arg3: memref<32x32xbf16, #tpu.memory_space<vmem>>, %arg4: memref<1x32xf32, #tpu.memory_space<vmem>>, %arg5: memref<22x96xf32, #tpu.memory_space<vmem>>, %arg6: memref<32x96xbf16, #tpu.memory_space<vmem>>, %arg7: memref<1x96xf32, #tpu.memory_space<vmem>>, %arg8: memref<1x1xf32, #tpu.memory_space<vmem>>) attributes {dimension_semantics = [], scalar_prefetch = 0 : i64, scratch_operands = 0 : i64, tpu.core_type = #tpu.core_type<tc>} {
    %c0 = arith.constant 0 : index
    %c0_0 = arith.constant 0 : index
    %0 = vector.load %arg0[%c0, %c0_0] : memref<4x32xf32, #tpu.memory_space<vmem>>, vector<4x32xf32>
    %1 = arith.truncf %0 : vector<4x32xf32> to vector<4x32xbf16>
    %c0_1 = arith.constant 0 : index
    %c0_2 = arith.constant 0 : index
    %2 = vector.load %arg3[%c0_1, %c0_2] : memref<32x32xbf16, #tpu.memory_space<vmem>>, vector<32x32xbf16>
    %cst = arith.constant dense<0.000000e+00> : vector<4x32xf32>
    %3 = tpu.matmul %1, %2, %cst {dimension_numbers = #tpu.dot_dimension_numbers<[1], [0], [0], [1], [0, 0, 1, 1], [], []>} : vector<4x32xbf16>, vector<32x32xbf16>, vector<4x32xf32> -> vector<4x32xf32>
    %c0_3 = arith.constant 0 : index
    %c0_4 = arith.constant 0 : index
    %4 = vector.load %arg4[%c0_3, %c0_4] : memref<1x32xf32, #tpu.memory_space<vmem>>, vector<1x32xf32>
    %5 = vector.broadcast %4 : vector<1x32xf32> to vector<4x32xf32>
    %6 = arith.addf %3, %5 : vector<4x32xf32>
    %7 = arith.mulf %6, %6 : vector<4x32xf32>
    %cst_5 = arith.constant dense<0.000000e+00> : vector<4xf32>
    %8 = vector.multi_reduction <add>, %7, %cst_5 [1] : vector<4x32xf32> to vector<4xf32>
    %9 = vector.shape_cast %8 : vector<4xf32> to vector<4x1xf32>
    %10 = math.sqrt %9 : vector<4x1xf32>
    %cst_6 = arith.constant 1.000000e-07 : f32
    %11 = vector.broadcast %cst_6 : f32 to vector<4x1xf32>
    %12 = arith.addf %10, %11 : vector<4x1xf32>
    %13 = tpu.reciprocal %12 {approx = true} : vector<4x1xf32> -> vector<4x1xf32>
    %14 = vector.broadcast %13 : vector<4x1xf32> to vector<4x32xf32>
    %15 = arith.mulf %6, %14 : vector<4x32xf32>
    %c0_7 = arith.constant 0 : index
    %c0_8 = arith.constant 0 : index
    %16 = vector.load %arg1[%c0_7, %c0_8] : memref<32x1xi32, #tpu.memory_space<vmem>>, vector<32x1xi32>
    %17 = tpu.iota {dimensions = array<i32: 1>} : vector<32x22xi32>
    %18 = vector.broadcast %16 : vector<32x1xi32> to vector<32x22xi32>
    %19 = arith.cmpi eq, %18, %17 : vector<32x22xi32>
    %cst_9 = arith.constant 1.000000e+00 : f32
    %cst_10 = arith.constant 0.000000e+00 : f32
    %20 = vector.broadcast %cst_9 : f32 to vector<32x22xf32>
    %21 = vector.broadcast %cst_10 : f32 to vector<32x22xf32>
    %22 = arith.select %19, %20, %21 : vector<32x22xi1>, vector<32x22xf32>
    %c0_11 = arith.constant 0 : index
    %c0_12 = arith.constant 0 : index
    %23 = vector.load %arg5[%c0_11, %c0_12] : memref<22x96xf32, #tpu.memory_space<vmem>>, vector<22x96xf32>
    %cst_13 = arith.constant dense<0.000000e+00> : vector<32x96xf32>
    %24 = tpu.matmul %22, %23, %cst_13 {dimension_numbers = #tpu.dot_dimension_numbers<[1], [0], [0], [1], [0, 0, 1, 1], [], []>} : vector<32x22xf32>, vector<22x96xf32>, vector<32x96xf32> -> vector<32x96xf32>
    %c0_14 = arith.constant 0 : index
    %c0_15 = arith.constant 0 : index
    %25 = vector.load %arg6[%c0_14, %c0_15] : memref<32x96xbf16, #tpu.memory_space<vmem>>, vector<32x96xbf16>
    %c0_16 = arith.constant 0 : index
    %c0_17 = arith.constant 0 : index
    %26 = vector.load %arg7[%c0_16, %c0_17] : memref<1x96xf32, #tpu.memory_space<vmem>>, vector<1x96xf32>
    %27 = vector.shape_cast %26 : vector<1x96xf32> to vector<1x96xf32>
    %28 = vector.broadcast %27 : vector<1x96xf32> to vector<4x96xf32>
    %c0_18 = arith.constant 0 : index
    %c0_19 = arith.constant 0 : index
    %29 = vector.load %arg2[%c0_18, %c0_19] : memref<4x1xi32, #tpu.memory_space<vmem>>, vector<4x1xi32>
    %cst_20 = arith.constant 0.000000e+00 : f32
    %30 = vector.broadcast %cst_20 : f32 to vector<4x32xf32>
    %31 = vector.extract_strided_slice %24 {offsets = [0, 0], sizes = [4, 96], strides = [1, 1]} : vector<32x96xf32> to vector<4x96xf32>
    %32 = arith.truncf %30 : vector<4x32xf32> to vector<4x32xbf16>
    %cst_21 = arith.constant dense<0.000000e+00> : vector<4x96xf32>
    %33 = tpu.matmul %32, %25, %cst_21 {dimension_numbers = #tpu.dot_dimension_numbers<[1], [0], [0], [1], [0, 0, 1, 1], [], []>} : vector<4x32xbf16>, vector<32x96xbf16>, vector<4x96xf32> -> vector<4x96xf32>
    %34 = arith.addf %33, %28 : vector<4x96xf32>
    %35 = vector.extract_strided_slice %31 {offsets = [0, 0], sizes = [4, 32], strides = [1, 1]} : vector<4x96xf32> to vector<4x32xf32>
    %36 = vector.extract_strided_slice %34 {offsets = [0, 0], sizes = [4, 32], strides = [1, 1]} : vector<4x96xf32> to vector<4x32xf32>
    %37 = arith.addf %35, %36 : vector<4x32xf32>
    %38 = vector.extract_strided_slice %31 {offsets = [0, 32], sizes = [4, 32], strides = [1, 1]} : vector<4x96xf32> to vector<4x32xf32>
    %39 = vector.extract_strided_slice %34 {offsets = [0, 32], sizes = [4, 32], strides = [1, 1]} : vector<4x96xf32> to vector<4x32xf32>
    %40 = arith.addf %38, %39 : vector<4x32xf32>
    %cst_22 = arith.constant 5.000000e-01 : f32
    %41 = vector.broadcast %cst_22 : f32 to vector<4x32xf32>
    %42 = arith.mulf %41, %37 : vector<4x32xf32>
    %43 = math.tanh %42 : vector<4x32xf32>
    %cst_23 = arith.constant 1.000000e+00 : f32
    %44 = vector.broadcast %cst_23 : f32 to vector<4x32xf32>
    %45 = arith.addf %43, %44 : vector<4x32xf32>
    %cst_24 = arith.constant 5.000000e-01 : f32
    %46 = vector.broadcast %cst_24 : f32 to vector<4x32xf32>
    %47 = arith.mulf %46, %45 : vector<4x32xf32>
    %cst_25 = arith.constant 5.000000e-01 : f32
    %48 = vector.broadcast %cst_25 : f32 to vector<4x32xf32>
    %49 = arith.mulf %48, %40 : vector<4x32xf32>
    %50 = math.tanh %49 : vector<4x32xf32>
    %cst_26 = arith.constant 1.000000e+00 : f32
    %51 = vector.broadcast %cst_26 : f32 to vector<4x32xf32>
    %52 = arith.addf %50, %51 : vector<4x32xf32>
    %cst_27 = arith.constant 5.000000e-01 : f32
    %53 = vector.broadcast %cst_27 : f32 to vector<4x32xf32>
    %54 = arith.mulf %53, %52 : vector<4x32xf32>
    %55 = vector.extract_strided_slice %31 {offsets = [0, 64], sizes = [4, 32], strides = [1, 1]} : vector<4x96xf32> to vector<4x32xf32>
    %56 = vector.extract_strided_slice %34 {offsets = [0, 64], sizes = [4, 32], strides = [1, 1]} : vector<4x96xf32> to vector<4x32xf32>
    %57 = arith.mulf %47, %56 : vector<4x32xf32>
    %58 = arith.addf %55, %57 : vector<4x32xf32>
    %59 = math.tanh %58 : vector<4x32xf32>
    %cst_28 = arith.constant 1.000000e+00 : f32
    %60 = vector.broadcast %cst_28 : f32 to vector<4x32xf32>
    %61 = arith.subf %60, %54 : vector<4x32xf32>
    %62 = arith.mulf %61, %59 : vector<4x32xf32>
    %63 = arith.mulf %54, %30 : vector<4x32xf32>
    %64 = arith.addf %62, %63 : vector<4x32xf32>
    %c0_i32 = arith.constant 0 : i32
    %65 = vector.broadcast %c0_i32 : i32 to vector<4x1xi32>
    %66 = arith.cmpi sgt, %29, %65 : vector<4x1xi32>
    %67 = vector.shape_cast %66 : vector<4x1xi1> to vector<4x1xi1>
    %68 = vector.broadcast %67 : vector<4x1xi1> to vector<4x32xi1>
    %69 = arith.select %68, %64, %30 : vector<4x32xi1>, vector<4x32xf32>
    %70 = vector.extract_strided_slice %24 {offsets = [4, 0], sizes = [4, 96], strides = [1, 1]} : vector<32x96xf32> to vector<4x96xf32>
    %71 = arith.truncf %69 : vector<4x32xf32> to vector<4x32xbf16>
    %cst_29 = arith.constant dense<0.000000e+00> : vector<4x96xf32>
    %72 = tpu.matmul %71, %25, %cst_29 {dimension_numbers = #tpu.dot_dimension_numbers<[1], [0], [0], [1], [0, 0, 1, 1], [], []>} : vector<4x32xbf16>, vector<32x96xbf16>, vector<4x96xf32> -> vector<4x96xf32>
    %73 = arith.addf %72, %28 : vector<4x96xf32>
    %74 = vector.extract_strided_slice %70 {offsets = [0, 0], sizes = [4, 32], strides = [1, 1]} : vector<4x96xf32> to vector<4x32xf32>
    %75 = vector.extract_strided_slice %73 {offsets = [0, 0], sizes = [4, 32], strides = [1, 1]} : vector<4x96xf32> to vector<4x32xf32>
    %76 = arith.addf %74, %75 : vector<4x32xf32>
    %77 = vector.extract_strided_slice %70 {offsets = [0, 32], sizes = [4, 32], strides = [1, 1]} : vector<4x96xf32> to vector<4x32xf32>
    %78 = vector.extract_strided_slice %73 {offsets = [0, 32], sizes = [4, 32], strides = [1, 1]} : vector<4x96xf32> to vector<4x32xf32>
    %79 = arith.addf %77, %78 : vector<4x32xf32>
    %cst_30 = arith.constant 5.000000e-01 : f32
    %80 = vector.broadcast %cst_30 : f32 to vector<4x32xf32>
    %81 = arith.mulf %80, %76 : vector<4x32xf32>
    %82 = math.tanh %81 : vector<4x32xf32>
    %cst_31 = arith.constant 1.000000e+00 : f32
    %83 = vector.broadcast %cst_31 : f32 to vector<4x32xf32>
    %84 = arith.addf %82, %83 : vector<4x32xf32>
    %cst_32 = arith.constant 5.000000e-01 : f32
    %85 = vector.broadcast %cst_32 : f32 to vector<4x32xf32>
    %86 = arith.mulf %85, %84 : vector<4x32xf32>
    %cst_33 = arith.constant 5.000000e-01 : f32
    %87 = vector.broadcast %cst_33 : f32 to vector<4x32xf32>
    %88 = arith.mulf %87, %79 : vector<4x32xf32>
    %89 = math.tanh %88 : vector<4x32xf32>
    %cst_34 = arith.constant 1.000000e+00 : f32
    %90 = vector.broadcast %cst_34 : f32 to vector<4x32xf32>
    %91 = arith.addf %89, %90 : vector<4x32xf32>
    %cst_35 = arith.constant 5.000000e-01 : f32
    %92 = vector.broadcast %cst_35 : f32 to vector<4x32xf32>
    %93 = arith.mulf %92, %91 : vector<4x32xf32>
    %94 = vector.extract_strided_slice %70 {offsets = [0, 64], sizes = [4, 32], strides = [1, 1]} : vector<4x96xf32> to vector<4x32xf32>
    %95 = vector.extract_strided_slice %73 {offsets = [0, 64], sizes = [4, 32], strides = [1, 1]} : vector<4x96xf32> to vector<4x32xf32>
    %96 = arith.mulf %86, %95 : vector<4x32xf32>
    %97 = arith.addf %94, %96 : vector<4x32xf32>
    %98 = math.tanh %97 : vector<4x32xf32>
    %cst_36 = arith.constant 1.000000e+00 : f32
    %99 = vector.broadcast %cst_36 : f32 to vector<4x32xf32>
    %100 = arith.subf %99, %93 : vector<4x32xf32>
    %101 = arith.mulf %100, %98 : vector<4x32xf32>
    %102 = arith.mulf %93, %69 : vector<4x32xf32>
    %103 = arith.addf %101, %102 : vector<4x32xf32>
    %c1_i32 = arith.constant 1 : i32
    %104 = vector.broadcast %c1_i32 : i32 to vector<4x1xi32>
    %105 = arith.cmpi sgt, %29, %104 : vector<4x1xi32>
    %106 = vector.shape_cast %105 : vector<4x1xi1> to vector<4x1xi1>
    %107 = vector.broadcast %106 : vector<4x1xi1> to vector<4x32xi1>
    %108 = arith.select %107, %103, %69 : vector<4x32xi1>, vector<4x32xf32>
    %109 = vector.extract_strided_slice %24 {offsets = [8, 0], sizes = [4, 96], strides = [1, 1]} : vector<32x96xf32> to vector<4x96xf32>
    %110 = arith.truncf %108 : vector<4x32xf32> to vector<4x32xbf16>
    %cst_37 = arith.constant dense<0.000000e+00> : vector<4x96xf32>
    %111 = tpu.matmul %110, %25, %cst_37 {dimension_numbers = #tpu.dot_dimension_numbers<[1], [0], [0], [1], [0, 0, 1, 1], [], []>} : vector<4x32xbf16>, vector<32x96xbf16>, vector<4x96xf32> -> vector<4x96xf32>
    %112 = arith.addf %111, %28 : vector<4x96xf32>
    %113 = vector.extract_strided_slice %109 {offsets = [0, 0], sizes = [4, 32], strides = [1, 1]} : vector<4x96xf32> to vector<4x32xf32>
    %114 = vector.extract_strided_slice %112 {offsets = [0, 0], sizes = [4, 32], strides = [1, 1]} : vector<4x96xf32> to vector<4x32xf32>
    %115 = arith.addf %113, %114 : vector<4x32xf32>
    %116 = vector.extract_strided_slice %109 {offsets = [0, 32], sizes = [4, 32], strides = [1, 1]} : vector<4x96xf32> to vector<4x32xf32>
    %117 = vector.extract_strided_slice %112 {offsets = [0, 32], sizes = [4, 32], strides = [1, 1]} : vector<4x96xf32> to vector<4x32xf32>
    %118 = arith.addf %116, %117 : vector<4x32xf32>
    %cst_38 = arith.constant 5.000000e-01 : f32
    %119 = vector.broadcast %cst_38 : f32 to vector<4x32xf32>
    %120 = arith.mulf %119, %115 : vector<4x32xf32>
    %121 = math.tanh %120 : vector<4x32xf32>
    %cst_39 = arith.constant 1.000000e+00 : f32
    %122 = vector.broadcast %cst_39 : f32 to vector<4x32xf32>
    %123 = arith.addf %121, %122 : vector<4x32xf32>
    %cst_40 = arith.constant 5.000000e-01 : f32
    %124 = vector.broadcast %cst_40 : f32 to vector<4x32xf32>
    %125 = arith.mulf %124, %123 : vector<4x32xf32>
    %cst_41 = arith.constant 5.000000e-01 : f32
    %126 = vector.broadcast %cst_41 : f32 to vector<4x32xf32>
    %127 = arith.mulf %126, %118 : vector<4x32xf32>
    %128 = math.tanh %127 : vector<4x32xf32>
    %cst_42 = arith.constant 1.000000e+00 : f32
    %129 = vector.broadcast %cst_42 : f32 to vector<4x32xf32>
    %130 = arith.addf %128, %129 : vector<4x32xf32>
    %cst_43 = arith.constant 5.000000e-01 : f32
    %131 = vector.broadcast %cst_43 : f32 to vector<4x32xf32>
    %132 = arith.mulf %131, %130 : vector<4x32xf32>
    %133 = vector.extract_strided_slice %109 {offsets = [0, 64], sizes = [4, 32], strides = [1, 1]} : vector<4x96xf32> to vector<4x32xf32>
    %134 = vector.extract_strided_slice %112 {offsets = [0, 64], sizes = [4, 32], strides = [1, 1]} : vector<4x96xf32> to vector<4x32xf32>
    %135 = arith.mulf %125, %134 : vector<4x32xf32>
    %136 = arith.addf %133, %135 : vector<4x32xf32>
    %137 = math.tanh %136 : vector<4x32xf32>
    %cst_44 = arith.constant 1.000000e+00 : f32
    %138 = vector.broadcast %cst_44 : f32 to vector<4x32xf32>
    %139 = arith.subf %138, %132 : vector<4x32xf32>
    %140 = arith.mulf %139, %137 : vector<4x32xf32>
    %141 = arith.mulf %132, %108 : vector<4x32xf32>
    %142 = arith.addf %140, %141 : vector<4x32xf32>
    %c2_i32 = arith.constant 2 : i32
    %143 = vector.broadcast %c2_i32 : i32 to vector<4x1xi32>
    %144 = arith.cmpi sgt, %29, %143 : vector<4x1xi32>
    %145 = vector.shape_cast %144 : vector<4x1xi1> to vector<4x1xi1>
    %146 = vector.broadcast %145 : vector<4x1xi1> to vector<4x32xi1>
    %147 = arith.select %146, %142, %108 : vector<4x32xi1>, vector<4x32xf32>
    %148 = vector.extract_strided_slice %24 {offsets = [12, 0], sizes = [4, 96], strides = [1, 1]} : vector<32x96xf32> to vector<4x96xf32>
    %149 = arith.truncf %147 : vector<4x32xf32> to vector<4x32xbf16>
    %cst_45 = arith.constant dense<0.000000e+00> : vector<4x96xf32>
    %150 = tpu.matmul %149, %25, %cst_45 {dimension_numbers = #tpu.dot_dimension_numbers<[1], [0], [0], [1], [0, 0, 1, 1], [], []>} : vector<4x32xbf16>, vector<32x96xbf16>, vector<4x96xf32> -> vector<4x96xf32>
    %151 = arith.addf %150, %28 : vector<4x96xf32>
    %152 = vector.extract_strided_slice %148 {offsets = [0, 0], sizes = [4, 32], strides = [1, 1]} : vector<4x96xf32> to vector<4x32xf32>
    %153 = vector.extract_strided_slice %151 {offsets = [0, 0], sizes = [4, 32], strides = [1, 1]} : vector<4x96xf32> to vector<4x32xf32>
    %154 = arith.addf %152, %153 : vector<4x32xf32>
    %155 = vector.extract_strided_slice %148 {offsets = [0, 32], sizes = [4, 32], strides = [1, 1]} : vector<4x96xf32> to vector<4x32xf32>
    %156 = vector.extract_strided_slice %151 {offsets = [0, 32], sizes = [4, 32], strides = [1, 1]} : vector<4x96xf32> to vector<4x32xf32>
    %157 = arith.addf %155, %156 : vector<4x32xf32>
    %cst_46 = arith.constant 5.000000e-01 : f32
    %158 = vector.broadcast %cst_46 : f32 to vector<4x32xf32>
    %159 = arith.mulf %158, %154 : vector<4x32xf32>
    %160 = math.tanh %159 : vector<4x32xf32>
    %cst_47 = arith.constant 1.000000e+00 : f32
    %161 = vector.broadcast %cst_47 : f32 to vector<4x32xf32>
    %162 = arith.addf %160, %161 : vector<4x32xf32>
    %cst_48 = arith.constant 5.000000e-01 : f32
    %163 = vector.broadcast %cst_48 : f32 to vector<4x32xf32>
    %164 = arith.mulf %163, %162 : vector<4x32xf32>
    %cst_49 = arith.constant 5.000000e-01 : f32
    %165 = vector.broadcast %cst_49 : f32 to vector<4x32xf32>
    %166 = arith.mulf %165, %157 : vector<4x32xf32>
    %167 = math.tanh %166 : vector<4x32xf32>
    %cst_50 = arith.constant 1.000000e+00 : f32
    %168 = vector.broadcast %cst_50 : f32 to vector<4x32xf32>
    %169 = arith.addf %167, %168 : vector<4x32xf32>
    %cst_51 = arith.constant 5.000000e-01 : f32
    %170 = vector.broadcast %cst_51 : f32 to vector<4x32xf32>
    %171 = arith.mulf %170, %169 : vector<4x32xf32>
    %172 = vector.extract_strided_slice %148 {offsets = [0, 64], sizes = [4, 32], strides = [1, 1]} : vector<4x96xf32> to vector<4x32xf32>
    %173 = vector.extract_strided_slice %151 {offsets = [0, 64], sizes = [4, 32], strides = [1, 1]} : vector<4x96xf32> to vector<4x32xf32>
    %174 = arith.mulf %164, %173 : vector<4x32xf32>
    %175 = arith.addf %172, %174 : vector<4x32xf32>
    %176 = math.tanh %175 : vector<4x32xf32>
    %cst_52 = arith.constant 1.000000e+00 : f32
    %177 = vector.broadcast %cst_52 : f32 to vector<4x32xf32>
    %178 = arith.subf %177, %171 : vector<4x32xf32>
    %179 = arith.mulf %178, %176 : vector<4x32xf32>
    %180 = arith.mulf %171, %147 : vector<4x32xf32>
    %181 = arith.addf %179, %180 : vector<4x32xf32>
    %c3_i32 = arith.constant 3 : i32
    %182 = vector.broadcast %c3_i32 : i32 to vector<4x1xi32>
    %183 = arith.cmpi sgt, %29, %182 : vector<4x1xi32>
    %184 = vector.shape_cast %183 : vector<4x1xi1> to vector<4x1xi1>
    %185 = vector.broadcast %184 : vector<4x1xi1> to vector<4x32xi1>
    %186 = arith.select %185, %181, %147 : vector<4x32xi1>, vector<4x32xf32>
    %187 = vector.extract_strided_slice %24 {offsets = [16, 0], sizes = [4, 96], strides = [1, 1]} : vector<32x96xf32> to vector<4x96xf32>
    %188 = arith.truncf %186 : vector<4x32xf32> to vector<4x32xbf16>
    %cst_53 = arith.constant dense<0.000000e+00> : vector<4x96xf32>
    %189 = tpu.matmul %188, %25, %cst_53 {dimension_numbers = #tpu.dot_dimension_numbers<[1], [0], [0], [1], [0, 0, 1, 1], [], []>} : vector<4x32xbf16>, vector<32x96xbf16>, vector<4x96xf32> -> vector<4x96xf32>
    %190 = arith.addf %189, %28 : vector<4x96xf32>
    %191 = vector.extract_strided_slice %187 {offsets = [0, 0], sizes = [4, 32], strides = [1, 1]} : vector<4x96xf32> to vector<4x32xf32>
    %192 = vector.extract_strided_slice %190 {offsets = [0, 0], sizes = [4, 32], strides = [1, 1]} : vector<4x96xf32> to vector<4x32xf32>
    %193 = arith.addf %191, %192 : vector<4x32xf32>
    %194 = vector.extract_strided_slice %187 {offsets = [0, 32], sizes = [4, 32], strides = [1, 1]} : vector<4x96xf32> to vector<4x32xf32>
    %195 = vector.extract_strided_slice %190 {offsets = [0, 32], sizes = [4, 32], strides = [1, 1]} : vector<4x96xf32> to vector<4x32xf32>
    %196 = arith.addf %194, %195 : vector<4x32xf32>
    %cst_54 = arith.constant 5.000000e-01 : f32
    %197 = vector.broadcast %cst_54 : f32 to vector<4x32xf32>
    %198 = arith.mulf %197, %193 : vector<4x32xf32>
    %199 = math.tanh %198 : vector<4x32xf32>
    %cst_55 = arith.constant 1.000000e+00 : f32
    %200 = vector.broadcast %cst_55 : f32 to vector<4x32xf32>
    %201 = arith.addf %199, %200 : vector<4x32xf32>
    %cst_56 = arith.constant 5.000000e-01 : f32
    %202 = vector.broadcast %cst_56 : f32 to vector<4x32xf32>
    %203 = arith.mulf %202, %201 : vector<4x32xf32>
    %cst_57 = arith.constant 5.000000e-01 : f32
    %204 = vector.broadcast %cst_57 : f32 to vector<4x32xf32>
    %205 = arith.mulf %204, %196 : vector<4x32xf32>
    %206 = math.tanh %205 : vector<4x32xf32>
    %cst_58 = arith.constant 1.000000e+00 : f32
    %207 = vector.broadcast %cst_58 : f32 to vector<4x32xf32>
    %208 = arith.addf %206, %207 : vector<4x32xf32>
    %cst_59 = arith.constant 5.000000e-01 : f32
    %209 = vector.broadcast %cst_59 : f32 to vector<4x32xf32>
    %210 = arith.mulf %209, %208 : vector<4x32xf32>
    %211 = vector.extract_strided_slice %187 {offsets = [0, 64], sizes = [4, 32], strides = [1, 1]} : vector<4x96xf32> to vector<4x32xf32>
    %212 = vector.extract_strided_slice %190 {offsets = [0, 64], sizes = [4, 32], strides = [1, 1]} : vector<4x96xf32> to vector<4x32xf32>
    %213 = arith.mulf %203, %212 : vector<4x32xf32>
    %214 = arith.addf %211, %213 : vector<4x32xf32>
    %215 = math.tanh %214 : vector<4x32xf32>
    %cst_60 = arith.constant 1.000000e+00 : f32
    %216 = vector.broadcast %cst_60 : f32 to vector<4x32xf32>
    %217 = arith.subf %216, %210 : vector<4x32xf32>
    %218 = arith.mulf %217, %215 : vector<4x32xf32>
    %219 = arith.mulf %210, %186 : vector<4x32xf32>
    %220 = arith.addf %218, %219 : vector<4x32xf32>
    %c4_i32 = arith.constant 4 : i32
    %221 = vector.broadcast %c4_i32 : i32 to vector<4x1xi32>
    %222 = arith.cmpi sgt, %29, %221 : vector<4x1xi32>
    %223 = vector.shape_cast %222 : vector<4x1xi1> to vector<4x1xi1>
    %224 = vector.broadcast %223 : vector<4x1xi1> to vector<4x32xi1>
    %225 = arith.select %224, %220, %186 : vector<4x32xi1>, vector<4x32xf32>
    %226 = vector.extract_strided_slice %24 {offsets = [20, 0], sizes = [4, 96], strides = [1, 1]} : vector<32x96xf32> to vector<4x96xf32>
    %227 = arith.truncf %225 : vector<4x32xf32> to vector<4x32xbf16>
    %cst_61 = arith.constant dense<0.000000e+00> : vector<4x96xf32>
    %228 = tpu.matmul %227, %25, %cst_61 {dimension_numbers = #tpu.dot_dimension_numbers<[1], [0], [0], [1], [0, 0, 1, 1], [], []>} : vector<4x32xbf16>, vector<32x96xbf16>, vector<4x96xf32> -> vector<4x96xf32>
    %229 = arith.addf %228, %28 : vector<4x96xf32>
    %230 = vector.extract_strided_slice %226 {offsets = [0, 0], sizes = [4, 32], strides = [1, 1]} : vector<4x96xf32> to vector<4x32xf32>
    %231 = vector.extract_strided_slice %229 {offsets = [0, 0], sizes = [4, 32], strides = [1, 1]} : vector<4x96xf32> to vector<4x32xf32>
    %232 = arith.addf %230, %231 : vector<4x32xf32>
    %233 = vector.extract_strided_slice %226 {offsets = [0, 32], sizes = [4, 32], strides = [1, 1]} : vector<4x96xf32> to vector<4x32xf32>
    %234 = vector.extract_strided_slice %229 {offsets = [0, 32], sizes = [4, 32], strides = [1, 1]} : vector<4x96xf32> to vector<4x32xf32>
    %235 = arith.addf %233, %234 : vector<4x32xf32>
    %cst_62 = arith.constant 5.000000e-01 : f32
    %236 = vector.broadcast %cst_62 : f32 to vector<4x32xf32>
    %237 = arith.mulf %236, %232 : vector<4x32xf32>
    %238 = math.tanh %237 : vector<4x32xf32>
    %cst_63 = arith.constant 1.000000e+00 : f32
    %239 = vector.broadcast %cst_63 : f32 to vector<4x32xf32>
    %240 = arith.addf %238, %239 : vector<4x32xf32>
    %cst_64 = arith.constant 5.000000e-01 : f32
    %241 = vector.broadcast %cst_64 : f32 to vector<4x32xf32>
    %242 = arith.mulf %241, %240 : vector<4x32xf32>
    %cst_65 = arith.constant 5.000000e-01 : f32
    %243 = vector.broadcast %cst_65 : f32 to vector<4x32xf32>
    %244 = arith.mulf %243, %235 : vector<4x32xf32>
    %245 = math.tanh %244 : vector<4x32xf32>
    %cst_66 = arith.constant 1.000000e+00 : f32
    %246 = vector.broadcast %cst_66 : f32 to vector<4x32xf32>
    %247 = arith.addf %245, %246 : vector<4x32xf32>
    %cst_67 = arith.constant 5.000000e-01 : f32
    %248 = vector.broadcast %cst_67 : f32 to vector<4x32xf32>
    %249 = arith.mulf %248, %247 : vector<4x32xf32>
    %250 = vector.extract_strided_slice %226 {offsets = [0, 64], sizes = [4, 32], strides = [1, 1]} : vector<4x96xf32> to vector<4x32xf32>
    %251 = vector.extract_strided_slice %229 {offsets = [0, 64], sizes = [4, 32], strides = [1, 1]} : vector<4x96xf32> to vector<4x32xf32>
    %252 = arith.mulf %242, %251 : vector<4x32xf32>
    %253 = arith.addf %250, %252 : vector<4x32xf32>
    %254 = math.tanh %253 : vector<4x32xf32>
    %cst_68 = arith.constant 1.000000e+00 : f32
    %255 = vector.broadcast %cst_68 : f32 to vector<4x32xf32>
    %256 = arith.subf %255, %249 : vector<4x32xf32>
    %257 = arith.mulf %256, %254 : vector<4x32xf32>
    %258 = arith.mulf %249, %225 : vector<4x32xf32>
    %259 = arith.addf %257, %258 : vector<4x32xf32>
    %c5_i32 = arith.constant 5 : i32
    %260 = vector.broadcast %c5_i32 : i32 to vector<4x1xi32>
    %261 = arith.cmpi sgt, %29, %260 : vector<4x1xi32>
    %262 = vector.shape_cast %261 : vector<4x1xi1> to vector<4x1xi1>
    %263 = vector.broadcast %262 : vector<4x1xi1> to vector<4x32xi1>
    %264 = arith.select %263, %259, %225 : vector<4x32xi1>, vector<4x32xf32>
    %265 = vector.extract_strided_slice %24 {offsets = [24, 0], sizes = [4, 96], strides = [1, 1]} : vector<32x96xf32> to vector<4x96xf32>
    %266 = arith.truncf %264 : vector<4x32xf32> to vector<4x32xbf16>
    %cst_69 = arith.constant dense<0.000000e+00> : vector<4x96xf32>
    %267 = tpu.matmul %266, %25, %cst_69 {dimension_numbers = #tpu.dot_dimension_numbers<[1], [0], [0], [1], [0, 0, 1, 1], [], []>} : vector<4x32xbf16>, vector<32x96xbf16>, vector<4x96xf32> -> vector<4x96xf32>
    %268 = arith.addf %267, %28 : vector<4x96xf32>
    %269 = vector.extract_strided_slice %265 {offsets = [0, 0], sizes = [4, 32], strides = [1, 1]} : vector<4x96xf32> to vector<4x32xf32>
    %270 = vector.extract_strided_slice %268 {offsets = [0, 0], sizes = [4, 32], strides = [1, 1]} : vector<4x96xf32> to vector<4x32xf32>
    %271 = arith.addf %269, %270 : vector<4x32xf32>
    %272 = vector.extract_strided_slice %265 {offsets = [0, 32], sizes = [4, 32], strides = [1, 1]} : vector<4x96xf32> to vector<4x32xf32>
    %273 = vector.extract_strided_slice %268 {offsets = [0, 32], sizes = [4, 32], strides = [1, 1]} : vector<4x96xf32> to vector<4x32xf32>
    %274 = arith.addf %272, %273 : vector<4x32xf32>
    %cst_70 = arith.constant 5.000000e-01 : f32
    %275 = vector.broadcast %cst_70 : f32 to vector<4x32xf32>
    %276 = arith.mulf %275, %271 : vector<4x32xf32>
    %277 = math.tanh %276 : vector<4x32xf32>
    %cst_71 = arith.constant 1.000000e+00 : f32
    %278 = vector.broadcast %cst_71 : f32 to vector<4x32xf32>
    %279 = arith.addf %277, %278 : vector<4x32xf32>
    %cst_72 = arith.constant 5.000000e-01 : f32
    %280 = vector.broadcast %cst_72 : f32 to vector<4x32xf32>
    %281 = arith.mulf %280, %279 : vector<4x32xf32>
    %cst_73 = arith.constant 5.000000e-01 : f32
    %282 = vector.broadcast %cst_73 : f32 to vector<4x32xf32>
    %283 = arith.mulf %282, %274 : vector<4x32xf32>
    %284 = math.tanh %283 : vector<4x32xf32>
    %cst_74 = arith.constant 1.000000e+00 : f32
    %285 = vector.broadcast %cst_74 : f32 to vector<4x32xf32>
    %286 = arith.addf %284, %285 : vector<4x32xf32>
    %cst_75 = arith.constant 5.000000e-01 : f32
    %287 = vector.broadcast %cst_75 : f32 to vector<4x32xf32>
    %288 = arith.mulf %287, %286 : vector<4x32xf32>
    %289 = vector.extract_strided_slice %265 {offsets = [0, 64], sizes = [4, 32], strides = [1, 1]} : vector<4x96xf32> to vector<4x32xf32>
    %290 = vector.extract_strided_slice %268 {offsets = [0, 64], sizes = [4, 32], strides = [1, 1]} : vector<4x96xf32> to vector<4x32xf32>
    %291 = arith.mulf %281, %290 : vector<4x32xf32>
    %292 = arith.addf %289, %291 : vector<4x32xf32>
    %293 = math.tanh %292 : vector<4x32xf32>
    %cst_76 = arith.constant 1.000000e+00 : f32
    %294 = vector.broadcast %cst_76 : f32 to vector<4x32xf32>
    %295 = arith.subf %294, %288 : vector<4x32xf32>
    %296 = arith.mulf %295, %293 : vector<4x32xf32>
    %297 = arith.mulf %288, %264 : vector<4x32xf32>
    %298 = arith.addf %296, %297 : vector<4x32xf32>
    %c6_i32 = arith.constant 6 : i32
    %299 = vector.broadcast %c6_i32 : i32 to vector<4x1xi32>
    %300 = arith.cmpi sgt, %29, %299 : vector<4x1xi32>
    %301 = vector.shape_cast %300 : vector<4x1xi1> to vector<4x1xi1>
    %302 = vector.broadcast %301 : vector<4x1xi1> to vector<4x32xi1>
    %303 = arith.select %302, %298, %264 : vector<4x32xi1>, vector<4x32xf32>
    %304 = vector.extract_strided_slice %24 {offsets = [28, 0], sizes = [4, 96], strides = [1, 1]} : vector<32x96xf32> to vector<4x96xf32>
    %305 = arith.truncf %303 : vector<4x32xf32> to vector<4x32xbf16>
    %cst_77 = arith.constant dense<0.000000e+00> : vector<4x96xf32>
    %306 = tpu.matmul %305, %25, %cst_77 {dimension_numbers = #tpu.dot_dimension_numbers<[1], [0], [0], [1], [0, 0, 1, 1], [], []>} : vector<4x32xbf16>, vector<32x96xbf16>, vector<4x96xf32> -> vector<4x96xf32>
    %307 = arith.addf %306, %28 : vector<4x96xf32>
    %308 = vector.extract_strided_slice %304 {offsets = [0, 0], sizes = [4, 32], strides = [1, 1]} : vector<4x96xf32> to vector<4x32xf32>
    %309 = vector.extract_strided_slice %307 {offsets = [0, 0], sizes = [4, 32], strides = [1, 1]} : vector<4x96xf32> to vector<4x32xf32>
    %310 = arith.addf %308, %309 : vector<4x32xf32>
    %311 = vector.extract_strided_slice %304 {offsets = [0, 32], sizes = [4, 32], strides = [1, 1]} : vector<4x96xf32> to vector<4x32xf32>
    %312 = vector.extract_strided_slice %307 {offsets = [0, 32], sizes = [4, 32], strides = [1, 1]} : vector<4x96xf32> to vector<4x32xf32>
    %313 = arith.addf %311, %312 : vector<4x32xf32>
    %cst_78 = arith.constant 5.000000e-01 : f32
    %314 = vector.broadcast %cst_78 : f32 to vector<4x32xf32>
    %315 = arith.mulf %314, %310 : vector<4x32xf32>
    %316 = math.tanh %315 : vector<4x32xf32>
    %cst_79 = arith.constant 1.000000e+00 : f32
    %317 = vector.broadcast %cst_79 : f32 to vector<4x32xf32>
    %318 = arith.addf %316, %317 : vector<4x32xf32>
    %cst_80 = arith.constant 5.000000e-01 : f32
    %319 = vector.broadcast %cst_80 : f32 to vector<4x32xf32>
    %320 = arith.mulf %319, %318 : vector<4x32xf32>
    %cst_81 = arith.constant 5.000000e-01 : f32
    %321 = vector.broadcast %cst_81 : f32 to vector<4x32xf32>
    %322 = arith.mulf %321, %313 : vector<4x32xf32>
    %323 = math.tanh %322 : vector<4x32xf32>
    %cst_82 = arith.constant 1.000000e+00 : f32
    %324 = vector.broadcast %cst_82 : f32 to vector<4x32xf32>
    %325 = arith.addf %323, %324 : vector<4x32xf32>
    %cst_83 = arith.constant 5.000000e-01 : f32
    %326 = vector.broadcast %cst_83 : f32 to vector<4x32xf32>
    %327 = arith.mulf %326, %325 : vector<4x32xf32>
    %328 = vector.extract_strided_slice %304 {offsets = [0, 64], sizes = [4, 32], strides = [1, 1]} : vector<4x96xf32> to vector<4x32xf32>
    %329 = vector.extract_strided_slice %307 {offsets = [0, 64], sizes = [4, 32], strides = [1, 1]} : vector<4x96xf32> to vector<4x32xf32>
    %330 = arith.mulf %320, %329 : vector<4x32xf32>
    %331 = arith.addf %328, %330 : vector<4x32xf32>
    %332 = math.tanh %331 : vector<4x32xf32>
    %cst_84 = arith.constant 1.000000e+00 : f32
    %333 = vector.broadcast %cst_84 : f32 to vector<4x32xf32>
    %334 = arith.subf %333, %327 : vector<4x32xf32>
    %335 = arith.mulf %334, %332 : vector<4x32xf32>
    %336 = arith.mulf %327, %303 : vector<4x32xf32>
    %337 = arith.addf %335, %336 : vector<4x32xf32>
    %c7_i32 = arith.constant 7 : i32
    %338 = vector.broadcast %c7_i32 : i32 to vector<4x1xi32>
    %339 = arith.cmpi sgt, %29, %338 : vector<4x1xi32>
    %340 = vector.shape_cast %339 : vector<4x1xi1> to vector<4x1xi1>
    %341 = vector.broadcast %340 : vector<4x1xi1> to vector<4x32xi1>
    %342 = arith.select %341, %337, %303 : vector<4x32xi1>, vector<4x32xf32>
    %343 = arith.mulf %342, %342 : vector<4x32xf32>
    %cst_85 = arith.constant dense<0.000000e+00> : vector<4xf32>
    %344 = vector.multi_reduction <add>, %343, %cst_85 [1] : vector<4x32xf32> to vector<4xf32>
    %345 = vector.shape_cast %344 : vector<4xf32> to vector<4x1xf32>
    %346 = math.sqrt %345 : vector<4x1xf32>
    %cst_86 = arith.constant 1.000000e-07 : f32
    %347 = vector.broadcast %cst_86 : f32 to vector<4x1xf32>
    %348 = arith.addf %346, %347 : vector<4x1xf32>
    %349 = tpu.reciprocal %348 {approx = true} : vector<4x1xf32> -> vector<4x1xf32>
    %350 = vector.broadcast %349 : vector<4x1xf32> to vector<4x32xf32>
    %351 = arith.mulf %342, %350 : vector<4x32xf32>
    %352 = arith.truncf %15 : vector<4x32xf32> to vector<4x32xbf16>
    %353 = arith.truncf %351 : vector<4x32xf32> to vector<4x32xbf16>
    %cst_87 = arith.constant dense<0.000000e+00> : vector<4x4xf32>
    %354 = tpu.matmul %352, %353, %cst_87 {dimension_numbers = #tpu.dot_dimension_numbers<[1], [1], [0], [0], [0, 0, 1, 0], [], []>} : vector<4x32xbf16>, vector<4x32xbf16>, vector<4x4xf32> -> vector<4x4xf32>
    %355 = tpu.iota {dimensions = array<i32: 0>} : vector<4x4xi32>
    %356 = tpu.iota {dimensions = array<i32: 1>} : vector<4x4xi32>
    %357 = arith.cmpi eq, %355, %356 : vector<4x4xi32>
    %cst_88 = arith.constant 0.000000e+00 : f32
    %358 = vector.broadcast %cst_88 : f32 to vector<4x4xf32>
    %359 = arith.select %357, %354, %358 : vector<4x4xi1>, vector<4x4xf32>
    %cst_89 = arith.constant dense<0.000000e+00> : vector<4xf32>
    %360 = vector.multi_reduction <add>, %359, %cst_89 [1] : vector<4x4xf32> to vector<4xf32>
    %361 = vector.shape_cast %360 : vector<4xf32> to vector<4x1xf32>
    %cst_90 = arith.constant 0.000000e+00 : f32
    %362 = vector.broadcast %cst_90 : f32 to vector<4x4xf32>
    %363 = arith.select %357, %354, %362 : vector<4x4xi1>, vector<4x4xf32>
    %cst_91 = arith.constant dense<0.000000e+00> : vector<4xf32>
    %364 = vector.multi_reduction <add>, %363, %cst_91 [0] : vector<4x4xf32> to vector<4xf32>
    %365 = vector.shape_cast %364 : vector<4xf32> to vector<1x4xf32>
    %cst_92 = arith.constant 2.000000e-01 : f32
    %366 = vector.broadcast %cst_92 : f32 to vector<4x4xf32>
    %367 = arith.addf %366, %354 : vector<4x4xf32>
    %368 = vector.broadcast %361 : vector<4x1xf32> to vector<4x4xf32>
    %369 = arith.subf %367, %368 : vector<4x4xf32>
    %cst_93 = arith.constant 0.000000e+00 : f32
    %370 = vector.broadcast %cst_93 : f32 to vector<4x4xf32>
    %371 = arith.maximumf %369, %370 : vector<4x4xf32>
    %cst_94 = arith.constant 0.000000e+00 : f32
    %372 = vector.broadcast %cst_94 : f32 to vector<4x4xf32>
    %373 = arith.select %357, %372, %371 : vector<4x4xi1>, vector<4x4xf32>
    %cst_95 = arith.constant 2.000000e-01 : f32
    %374 = vector.broadcast %cst_95 : f32 to vector<4x4xf32>
    %375 = arith.addf %374, %354 : vector<4x4xf32>
    %376 = vector.broadcast %365 : vector<1x4xf32> to vector<4x4xf32>
    %377 = arith.subf %375, %376 : vector<4x4xf32>
    %cst_96 = arith.constant 0.000000e+00 : f32
    %378 = vector.broadcast %cst_96 : f32 to vector<4x4xf32>
    %379 = arith.maximumf %377, %378 : vector<4x4xf32>
    %cst_97 = arith.constant 0.000000e+00 : f32
    %380 = vector.broadcast %cst_97 : f32 to vector<4x4xf32>
    %381 = arith.select %357, %380, %379 : vector<4x4xi1>, vector<4x4xf32>
    %382 = vector.shape_cast %373 : vector<4x4xf32> to vector<1x4x4xf32>
    %cst_98 = arith.constant dense<0.000000e+00> : vector<1xf32>
    %383 = vector.multi_reduction <add>, %382, %cst_98 [1, 2] : vector<1x4x4xf32> to vector<1xf32>
    %384 = vector.shape_cast %383 : vector<1xf32> to vector<1x1x1xf32>
    %385 = vector.extract %384[0, 0, 0] : f32 from vector<1x1x1xf32>
    %386 = vector.broadcast %385 : f32 to vector<1x1xf32>
    %387 = vector.shape_cast %381 : vector<4x4xf32> to vector<1x4x4xf32>
    %cst_99 = arith.constant dense<0.000000e+00> : vector<1xf32>
    %388 = vector.multi_reduction <add>, %387, %cst_99 [1, 2] : vector<1x4x4xf32> to vector<1xf32>
    %389 = vector.shape_cast %388 : vector<1xf32> to vector<1x1x1xf32>
    %390 = vector.extract %389[0, 0, 0] : f32 from vector<1x1x1xf32>
    %391 = vector.broadcast %390 : f32 to vector<1x1xf32>
    %392 = arith.addf %386, %391 : vector<1x1xf32>
    %cst_100 = arith.constant 2.500000e-01 : f32
    %393 = vector.broadcast %cst_100 : f32 to vector<1x1xf32>
    %394 = arith.mulf %392, %393 : vector<1x1xf32>
    %c0_101 = arith.constant 0 : index
    %c0_102 = arith.constant 0 : index
    %395 = vector.load %arg8[%c0_101, %c0_102] : memref<1x1xf32, #tpu.memory_space<vmem>>, vector<1x1xf32>
    tpu.vector_store %arg8[%c0_101, %c0_102], %394 {strides = array<i32>} : memref<1x1xf32, #tpu.memory_space<vmem>>, vector<1x1xf32>,
    return
  }
}

</mosaic_0001>

<llo_original>
// kernel: vsefc_forward.1
$region0: #{vsefc_forward.1}
  #allocation0 [shape = 'u32[]', space=smem, size = 0x4, offset = 0x4, fixed_abs, tag = 'smem constant byte address 0x4 - core index']
  #allocation1 [shape = 'u32[144,128]{1,0:T(1,128)}', space=vmem, size = 0x12000, scoped, tag = 'internal scratch']
  %s0 = inlined_call_operand.vmem [shape: f32[4,32], index: 0, kind: input, shape index: {}]
  %s1 = inlined_call_operand.vmem [shape: s32[32,1], index: 1, kind: input, shape index: {}]
  %s2 = inlined_call_operand.vmem [shape: s32[4,1], index: 2, kind: input, shape index: {}]
  %s3 = inlined_call_operand.vmem [shape: bf16[32,32], index: 3, kind: input, shape index: {}]
  %s4 = inlined_call_operand.vmem [shape: f32[1,32], index: 4, kind: input, shape index: {}]
  %s5 = inlined_call_operand.vmem [shape: f32[22,96], index: 5, kind: input, shape index: {}]
  %s6 = inlined_call_operand.vmem [shape: bf16[32,96], index: 6, kind: input, shape index: {}]
  %s7 = inlined_call_operand.vmem [shape: f32[1,96], index: 7, kind: input, shape index: {}]
  %s8 = inlined_call_operand.hbm [shape: f32[1,1], index: 8, kind: output, shape index: {}]
  %s9 = sld [smem:[#allocation0]]
  $region42: #{vsefc_forward.1} parent=0
    _
  %s11 = ssub.s32 1, %s9
  %s12 = scalar_select 0, %s11, %s9
  $region1: #{vsefc_forward.1} parent=0
    #allocation2 [shape = 'u8[512]{0}', space=vmem, size = 0x400, scoped, tag = 'output window, operand 0, single buffered']
    #allocation3 [shape = 's32[1]{0}', space=sflag, size = 0x4, scoped, tag = 'scoped memory for vsefc_forward.1']
    %13 = vsyncpa [#allocation3], 0
    // Predicated region
    $region2: #{vsefc_forward.1} parent=1 // pred_check
      _
    $region3: #{vsefc_forward.1} parent=1 // pred_check_branch
      %15 = sbr.rel (0) target = $region5
    $region4: #{vsefc_forward.1} parent=1 // pred_region
      _
    $region5: #{vsefc_forward.1} parent=1 // pred_fallthru
      _
    // Predicated region
    $region6: #{vsefc_forward.1} parent=1 // pred_check
      _
    $region7: #{vsefc_forward.1} parent=1 // pred_check_branch
      %17 = sbr.rel (0) target = $region9
    $region8: #{vsefc_forward.1} parent=1 // pred_region
      _
    $region9: #{vsefc_forward.1} parent=1 // pred_fallthru
      _
    // Predicated region
    $region10: #{vsefc_forward.1} parent=1 // pred_check
      _
    $region11: #{vsefc_forward.1} parent=1 // pred_check_branch
      %19 = sbr.rel (0) target = $region13
    $region12: #{vsefc_forward.1} parent=1 // pred_region
      _
    $region13: #{vsefc_forward.1} parent=1 // pred_fallthru
      _
    // Predicated region
    $region14: #{vsefc_forward.1} parent=1 // pred_check
      _
    $region15: #{vsefc_forward.1} parent=1 // pred_check_branch
      %21 = sbr.rel (0) target = $region17
    $region16: #{vsefc_forward.1} parent=1 // pred_region
      _
    $region17: #{vsefc_forward.1} parent=1 // pred_fallthru
      _
    // Predicated region
    $region18: #{vsefc_forward.1} parent=1 // pred_check
      _
    $region19: #{vsefc_forward.1} parent=1 // pred_check_branch
      %23 = sbr.rel (0) target = $region21
    $region20: #{vsefc_forward.1} parent=1 // pred_region
      _
    $region21: #{vsefc_forward.1} parent=1 // pred_fallthru
      _
    // Predicated region
    $region22: #{vsefc_forward.1} parent=1 // pred_check
      _
    $region23: #{vsefc_forward.1} parent=1 // pred_check_branch
      %25 = sbr.rel (0) target = $region25
    $region24: #{vsefc_forward.1} parent=1 // pred_region
      _
    $region25: #{vsefc_forward.1} parent=1 // pred_fallthru
      _
    // Predicated region
    $region26: #{vsefc_forward.1} parent=1 // pred_check
      _
    $region27: #{vsefc_forward.1} parent=1 // pred_check_branch
      %27 = sbr.rel (0) target = $region29
    $region28: #{vsefc_forward.1} parent=1 // pred_region
      _
    $region29: #{vsefc_forward.1} parent=1 // pred_fallthru
      _
    // Predicated region
    $region30: #{vsefc_forward.1} parent=1 // pred_check
      _
    $region31: #{vsefc_forward.1} parent=1 // pred_check_branch
      %29 = sbr.rel (0) target = $region33
    $region32: #{vsefc_forward.1} parent=1 // pred_region
      _
    $region33: #{vsefc_forward.1} parent=1 // pred_fallthru
      _
    %v31 = vld [vmem:[%s0] sm:$0xf]
    %v32 = vpack.c.bf16 %v31, %v31
    %v33 = vld [vmem:[%s3] sm:$0xf]
    %v34 = vld [vmem:[%s3 + $0x4] sm:$0xf]
    %v35 = vld [vmem:[%s3 + $0x8] sm:$0xf]
    %v36 = vld [vmem:[%s3 + $0xc] sm:$0xf]
    %v37 = vld [vmem:[%s4] sm:$0x1]
    %v39 = vlaneseq
    %v40 = vshrl.u32 %v39, 7
    %v41 = vsub.s32 0, %v40
    %v42 = vrot.slane %v37, %v41
    %v48 = vunpack.c.l.b16 %v33
    %v49 = vunpack.c.l.b16 %v34
    %v50 = vunpack.c.l.b16 %v35
    %v51 = vunpack.c.l.b16 %v36
    %v52 = vpack.c.b16 %v49, %v48
    %v53 = vpack.c.b16 %v51, %v50
    %vm56 = vcmask 261120
    %v58 = vsel %vm56, %v32, 0
    %60 = vmatprep.subr.bf16.mxu0 0
    %61 = vmatpush1.bf16.msra.mxu0 %v52
    %62 = vmatprep.subr.bf16.mxu0 0
    %63 = vmatpush1.bf16.msra.mxu0 %v53
    %64 = vmatprep.subr.bf16.mxu0 0
    %65 = vmatpush1.bf16.msra.mxu0 0
    %66 = vmatprep.subr.bf16.mxu0 0
    %67 = vmatpush1.bf16.msra.mxu0 0
    %68 = vmatprep.subr.bf16.mxu0 0
    %69 = vmatpush1.bf16.msra.mxu0 0
    %70 = vmatprep.subr.bf16.mxu0 0
    %71 = vmatpush1.bf16.msra.mxu0 0
    %72 = vmatprep.subr.bf16.mxu0 0
    %73 = vmatpush1.bf16.msra.mxu0 0
    %74 = vmatprep.subr.bf16.mxu0 0
    %75 = vmatpush1.bf16.msra.mxu0 0
    %76 = vmatprep.subr.bf16.mxu0 0
    %77 = vmatpush1.bf16.msra.mxu0 0
    %78 = vmatprep.subr.bf16.mxu0 0
    %79 = vmatpush1.bf16.msra.mxu0 0
    %80 = vmatprep.subr.bf16.mxu0 0
    %81 = vmatpush1.bf16.msra.mxu0 0
    %82 = vmatprep.subr.bf16.mxu0 0
    %83 = vmatpush1.bf16.msra.mxu0 0
    %84 = vmatprep.subr.bf16.mxu0 0
    %85 = vmatpush1.bf16.msra.mxu0 0
    %86 = vmatprep.subr.bf16.mxu0 0
    %87 = vmatpush1.bf16.msra.mxu0 0
    %88 = vmatprep.subr.bf16.mxu0 0
    %89 = vmatpush1.bf16.msra.mxu0 0
    %90 = vmatprep.subr.bf16.mxu0 0
    %91 = vmatpush1.bf16.msra.mxu0 0
    %92 = vmatprep.mubr.bf16.mxu0 0
    %93 = vmatmul.mubr.bf16.gmra.mrb[0].mxu0 %v58
    %v94 = vpop.f32.mrb[0].mxu0
    %v95 = vadd.f32 %v42, %v94
    %v96 = vpop.f32.mrb[0].mxu0
    %v97 = vpop.f32.mrb[0].mxu0
    %v98 = vpop.f32.mrb[0].mxu0
    %99 = vdwg.mxu0
    %v100 = vmul.f32 %v95, %v95
    %vm101 = vcmask 257024
    %v102 = vsel %vm101, %v100, 0.0
    %103 = vadd.xlane.f32.xlu0 %v102
    %v104 = vpop.xlane.xlu0 %103
    %v105 = vrsqrt.pop %v104
    %v106 = vmul.f32 %v104, %v105
    %vm107 = vcmp.eq.f32.partialorder %v104, inf
    %v108 = vsel %vm107, %v104, %v106
    %vm109 = vcmp.eq.f32.partialorder %v104, 0.0
    %v110 = vand.u32 %v104, 2147483648
    %v111 = vsel %vm109, %v110, %v108
    %v112 = vadd.f32 %v111, 1e-07
    %v113 = vrcp.pop %v112
    %v114 = vmul.f32 %v95, %v113
    %v115 = vld [vmem:[%s1] sm:$0xff]
    %v116 = vld [vmem:[%s1 + $0x8] sm:$0xff]
    %v117 = vld [vmem:[%s1 + $0x10] sm:$0xff]
    %v118 = vld [vmem:[%s1 + $0x18] sm:$0xff]
    %v119 = vlaneseq
    %v120 = vand.u32 %v119, 127
    %121 = vset.pattern.permute.xlu0 0
    %122 = vperm.xlu0 %121, %v115
    %v123 = vpop.permute.xlu0 %122
    %124 = vset.pattern.permute.xlu0 0
    %125 = vperm.xlu0 %124, %v116
    %v126 = vpop.permute.xlu0 %125
    %127 = vset.pattern.permute.xlu0 0
    %128 = vperm.xlu0 %127, %v117
    %v129 = vpop.permute.xlu0 %128
    %130 = vset.pattern.permute.xlu0 0
    %131 = vperm.xlu0 %130, %v118
    %v132 = vpop.permute.xlu0 %131
    %vm133 = vcmp.eq.s32.totalorder %v123, %v120
    %vm134 = vcmp.eq.s32.totalorder %v126, %v120
    %vm135 = vcmp.eq.s32.totalorder %v129, %v120
    %vm136 = vcmp.eq.s32.totalorder %v132, %v120
    %v137 = vsel %vm133, 1.0, 0.0
    %v138 = vsel %vm134, 1.0, 0.0
    %v139 = vsel %vm135, 1.0, 0.0
    %v140 = vsel %vm136, 1.0, 0.0
    %v141 = vld [vmem:[%s5] sm:$0xff]
    %v142 = vld [vmem:[%s5 + $0x8] sm:$0xff]
    %v143 = vld [vmem:[%s5 + $0x10] sm:$0x3f]
    %vm144 = vcmask 179200
    %v146 = vsel %vm144, %v137, 0
    %v149 = vsel %vm144, %v138, 0
    %v152 = vsel %vm144, %v139, 0
    %v155 = vsel %vm144, %v140, 0
    %vm157 = vcmask 1045504
    %v159 = vsel %vm157, %v143, 0
    %161 = vmatprep.subr.mxu0 0.0
    %162 = vmatpush1.msra.mxu0 %v141
    %163 = vmatprep.subr.mxu0 0.0
    %164 = vmatpush1.msra.mxu0 %v142
    %165 = vmatprep.subr.mxu0 0.0
    %166 = vmatpush1.msra.mxu0 %v159
    %167 = vmatprep.subr.mxu0 0.0
    %168 = vmatpush1.msra.mxu0 0.0
    %169 = vmatprep.subr.mxu0 0.0
    %170 = vmatpush1.msra.mxu0 0.0
    %171 = vmatprep.subr.mxu0 0.0
    %172 = vmatpush1.msra.mxu0 0.0
    %173 = vmatprep.subr.mxu0 0.0
    %174 = vmatpush1.msra.mxu0 0.0
    %175 = vmatprep.subr.mxu0 0.0
    %176 = vmatpush1.msra.mxu0 0.0
    %177 = vmatprep.subr.mxu0 0.0
    %178 = vmatpush1.msra.mxu0 0.0
    %179 = vmatprep.subr.mxu0 0.0
    %180 = vmatpush1.msra.mxu0 0.0
    %181 = vmatprep.subr.mxu0 0.0
    %182 = vmatpush1.msra.mxu0 0.0
    %183 = vmatprep.subr.mxu0 0.0
    %184 = vmatpush1.msra.mxu0 0.0
    %185 = vmatprep.subr.mxu0 0.0
    %186 = vmatpush1.msra.mxu0 0.0
    %187 = vmatprep.subr.mxu0 0.0
    %188 = vmatpush1.msra.mxu0 0.0
    %189 = vmatprep.subr.mxu0 0.0
    %190 = vmatpush1.msra.mxu0 0.0
    %191 = vmatprep.subr.mxu0 0.0
    %192 = vmatpush1.msra.mxu0 0.0
    %193 = vmatprep.subr.mxu0 0.0
    %194 = vmatpush1.msra.mxu0 0.0
    %195 = vmatprep.subr.mxu0 0.0
    %196 = vmatpush1.msra.mxu0 0.0
    %197 = vmatprep.subr.mxu0 0.0
    %198 = vmatpush1.msra.mxu0 0.0
    %199 = vmatprep.subr.mxu0 0.0
    %200 = vmatpush1.msra.mxu0 0.0
    %201 = vmatprep.subr.mxu0 0.0
    %202 = vmatpush1.msra.mxu0 0.0
    %203 = vmatprep.subr.mxu0 0.0
    %204 = vmatpush1.msra.mxu0 0.0
    %205 = vmatprep.subr.mxu0 0.0
    %206 = vmatpush1.msra.mxu0 0.0
    %207 = vmatprep.subr.mxu0 0.0
    %208 = vmatpush1.msra.mxu0 0.0
    %209 = vmatprep.subr.mxu0 0.0
    %210 = vmatpush1.msra.mxu0 0.0
    %211 = vmatprep.subr.mxu0 0.0
    %212 = vmatpush1.msra.mxu0 0.0
    %213 = vmatprep.subr.mxu0 0.0
    %214 = vmatpush1.msra.mxu0 0.0
    %215 = vmatprep.subr.mxu0 0.0
    %216 = vmatpush1.msra.mxu0 0.0
    %217 = vmatprep.subr.mxu0 0.0
    %218 = vmatpush1.msra.mxu0 0.0
    %219 = vmatprep.subr.mxu0 0.0
    %220 = vmatpush1.msra.mxu0 0.0
    %221 = vmatprep.subr.mxu0 0.0
    %222 = vmatpush1.msra.mxu0 0.0
    %223 = vmatprep.subr.mxu0 0.0
    %224 = vmatpush1.msra.mxu0 0.0
    %225 = vmatprep.mubr.f32.mxu0 0.0
    %226 = vmatmul.mubr.f32.gmra.mrb[0].mxu0 %v146
    %v227 = vpop.f32.mrb[0].mxu0
    %v228 = vadd.f32 0.0, %v227
    %v229 = vpop.f32.mrb[0].mxu0
    %230 = vmatprep.mubr.f32.mxu0 0.0
    %231 = vmatmul.mubr.f32.gmra.mrb[0].mxu0 %v149
    %v232 = vpop.f32.mrb[0].mxu0
    %v233 = vadd.f32 0.0, %v232
    %v234 = vpop.f32.mrb[0].mxu0
    %235 = vmatprep.mubr.f32.mxu0 0.0
    %236 = vmatmul.mubr.f32.gmra.mrb[0].mxu0 %v152
    %v237 = vpop.f32.mrb[0].mxu0
    %v238 = vadd.f32 0.0, %v237
    %v239 = vpop.f32.mrb[0].mxu0
    %240 = vmatprep.mubr.f32.mxu0 0.0
    %241 = vmatmul.mubr.f32.gmra.mrb[0].mxu0 %v155
    %v242 = vpop.f32.mrb[0].mxu0
    %v243 = vadd.f32 0.0, %v242
    %v244 = vpop.f32.mrb[0].mxu0
    %245 = vdwg.mxu0
    %v246 = vld [vmem:[%s6] sm:$0xf]
    %v247 = vld [vmem:[%s6 + $0x4] sm:$0xf]
    %v248 = vld [vmem:[%s6 + $0x8] sm:$0xf]
    %v249 = vld [vmem:[%s6 + $0xc] sm:$0xf]
    %v250 = vld [vmem:[%s7] sm:$0x1]
    %v252 = vlaneseq
    %v253 = vshrl.u32 %v252, 7
    %v254 = vsub.s32 0, %v253
    %v255 = vrot.slane %v250, %v254
    %v257 = vld [vmem:[%s2] sm:$0xf]
    %v262 = vunpack.c.l.b16 %v246
    %v263 = vunpack.c.l.b16 %v247
    %v264 = vunpack.c.l.b16 %v248
    %v265 = vunpack.c.l.b16 %v249
    %v266 = vpack.c.b16 %v263, %v262
    %v267 = vpack.c.b16 %v265, %v264
    %v271 = vsel %vm56, 0, 0
    %273 = vmatprep.subr.bf16.mxu0 0
    %274 = vmatpush1.bf16.msra.mxu0 %v266
    %275 = vmatprep.subr.bf16.mxu0 0
    %276 = vmatpush1.bf16.msra.mxu0 %v267
    %277 = vmatprep.subr.bf16.mxu0 0
    %278 = vmatpush1.bf16.msra.mxu0 0
    %279 = vmatprep.subr.bf16.mxu0 0
    %280 = vmatpush1.bf16.msra.mxu0 0
    %281 = vmatprep.subr.bf16.mxu0 0
    %282 = vmatpush1.bf16.msra.mxu0 0
    %283 = vmatprep.subr.bf16.mxu0 0
    %284 = vmatpush1.bf16.msra.mxu0 0
    %285 = vmatprep.subr.bf16.mxu0 0
    %286 = vmatpush1.bf16.msra.mxu0 0
    %287 = vmatprep.subr.bf16.mxu0 0
    %288 = vmatpush1.bf16.msra.mxu0 0
    %289 = vmatprep.subr.bf16.mxu0 0
    %290 = vmatpush1.bf16.msra.mxu0 0
    %291 = vmatprep.subr.bf16.mxu0 0
    %292 = vmatpush1.bf16.msra.mxu0 0
    %293 = vmatprep.subr.bf16.mxu0 0
    %294 = vmatpush1.bf16.msra.mxu0 0
    %295 = vmatprep.subr.bf16.mxu0 0
    %296 = vmatpush1.bf16.msra.mxu0 0
    %297 = vmatprep.subr.bf16.mxu0 0
    %298 = vmatpush1.bf16.msra.mxu0 0
    %299 = vmatprep.subr.bf16.mxu0 0
    %300 = vmatpush1.bf16.msra.mxu0 0
    %301 = vmatprep.subr.bf16.mxu0 0
    %302 = vmatpush1.bf16.msra.mxu0 0
    %303 = vmatprep.subr.bf16.mxu0 0
    %304 = vmatpush1.bf16.msra.mxu0 0
    %305 = vmatprep.mubr.bf16.mxu0 0
    %306 = vmatmul.mubr.bf16.gmra.mrb[0].mxu0 %v271
    %v307 = vpop.f32.mrb[0].mxu0
    %v308 = vadd.f32 %v255, %v307
    %v309 = vpop.f32.mrb[0].mxu0
    %v310 = vpop.f32.mrb[0].mxu0
    %v311 = vpop.f32.mrb[0].mxu0
    %312 = vdwg.mxu0
    %v313 = vadd.f32 %v228, %v308
    %v314 = vmul.f32 %v313, 0.5
    %v315 = vtanh.pop %v314
    %v316 = vadd.f32 %v315, 1.0
    %v317 = vmul.f32 %v316, 0.5
    %319 = vrot.lane.b32.xlu0 %v308, 64
    %v320 = vpop.permute.xlu0 %319
    %v322 = vmul.f32 %v317, %v320
    %324 = vrot.lane.b32.xlu0 %v322, 64
    %v325 = vpop.permute.xlu0 %324
    %v327 = vadd.f32 %v228, %v325
    %v328 = vtanh.pop %v327
    %v329 = vsub.f32 1.0, %v317
    %331 = vrot.lane.b32.xlu0 %v328, 96
    %v332 = vpop.permute.xlu0 %331
    %v334 = vmul.f32 %v329, %v332
    %v335 = vmul.f32 %v317, 0.0
    %v336 = vadd.f32 %v334, %v335
    %vm337 = vcmp.gt.s32.totalorder %v257, 0
    %v338 = vsel %vm337, 1, 0
    %339 = vset.pattern.permute.xlu0 0
    %340 = vperm.xlu0 %339, %v338
    %v341 = vpop.permute.xlu0 %340
    %vm342 = vcmp.eq.s32.totalorder %v341, 1
    %v343 = vsel %vm342, %v336, 0.0
    %v344 = vpack.c.bf16 %v343, %v343
    %346 = vrot.lane.b32.xlu0 %v344, 96
    %v347 = vpop.permute.xlu0 %346
    %v349 = vsel %vm56, %v347, 0
    %351 = vmatprep.subr.bf16.mxu0 0
    %352 = vmatpush1.bf16.msra.mxu0 %v266
    %353 = vmatprep.subr.bf16.mxu0 0
    %354 = vmatpush1.bf16.msra.mxu0 %v267
    %355 = vmatprep.subr.bf16.mxu0 0
    %356 = vmatpush1.bf16.msra.mxu0 0
    %357 = vmatprep.subr.bf16.mxu0 0
    %358 = vmatpush1.bf16.msra.mxu0 0
    %359 = vmatprep.subr.bf16.mxu0 0
    %360 = vmatpush1.bf16.msra.mxu0 0
    %361 = vmatprep.subr.bf16.mxu0 0
    %362 = vmatpush1.bf16.msra.mxu0 0
    %363 = vmatprep.subr.bf16.mxu0 0
    %364 = vmatpush1.bf16.msra.mxu0 0
    %365 = vmatprep.subr.bf16.mxu0 0
    %366 = vmatpush1.bf16.msra.mxu0 0
    %367 = vmatprep.subr.bf16.mxu0 0
    %368 = vmatpush1.bf16.msra.mxu0 0
    %369 = vmatprep.subr.bf16.mxu0 0
    %370 = vmatpush1.bf16.msra.mxu0 0
    %371 = vmatprep.subr.bf16.mxu0 0
    %372 = vmatpush1.bf16.msra.mxu0 0
    %373 = vmatprep.subr.bf16.mxu0 0
    %374 = vmatpush1.bf16.msra.mxu0 0
    %375 = vmatprep.subr.bf16.mxu0 0
    %376 = vmatpush1.bf16.msra.mxu0 0
    %377 = vmatprep.subr.bf16.mxu0 0
    %378 = vmatpush1.bf16.msra.mxu0 0
    %379 = vmatprep.subr.bf16.mxu0 0
    %380 = vmatpush1.bf16.msra.mxu0 0
    %381 = vmatprep.subr.bf16.mxu0 0
    %382 = vmatpush1.bf16.msra.mxu0 0
    %383 = vmatprep.mubr.bf16.mxu0 0
    %384 = vmatmul.mubr.bf16.gmra.mrb[0].mxu0 %v349
    %v385 = vpop.f32.mrb[0].mxu0
    %v386 = vadd.f32 %v255, %v385
    %v387 = vpop.f32.mrb[0].mxu0
    %v388 = vpop.f32.mrb[0].mxu0
    %v389 = vpop.f32.mrb[0].mxu0
    %390 = vdwg.mxu0
    %v392 = vrot.slane %v386, 4
    %v394 = vadd.f32 %v228, %v392
    %v395 = vmul.f32 %v394, 0.5
    %v396 = vtanh.pop %v395
    %v397 = vadd.f32 %v396, 1.0
    %v398 = vmul.f32 %v397, 0.5
    %399 = vrot.lane.b32.xlu0 %v392, 64
    %v400 = vpop.permute.xlu0 %399
    %v402 = vmul.f32 %v398, %v400
    %404 = vrot.lane.b32.xlu0 %v402, 64
    %v405 = vpop.permute.xlu0 %404
    %v407 = vadd.f32 %v228, %v405
    %v408 = vtanh.pop %v407
    %v409 = vsub.f32 1.0, %v398
    %411 = vrot.lane.b32.xlu0 %v408, 96
    %v412 = vpop.permute.xlu0 %411
    %v414 = vmul.f32 %v409, %v412
    %v416 = vrot.slane %v343, 4
    %v418 = vmul.f32 %v398, %v416
    %v419 = vadd.f32 %v414, %v418
    %vm420 = vcmp.gt.s32.totalorder %v257, 1
    %v421 = vsel %vm420, 1, 0
    %422 = vset.pattern.permute.xlu0 0
    %423 = vperm.xlu0 %422, %v421
    %v424 = vpop.permute.xlu0 %423
    %vm425 = vcmp.eq.s32.totalorder %v424, 1
    %v427 = vrot.slane %v419, 4
    %428 = vrot.lane.b32.xlu0 %v427, 96
    %v429 = vpop.permute.xlu0 %428
    %431 = vrot.lane.b32.xlu0 %v343, 96
    %v432 = vpop.permute.xlu0 %431
    %v434 = vsel %vm425, %v429, %v432
    %v435 = vpack.c.bf16 %v434, %v434
    %v437 = vsel %vm56, %v435, 0
    %439 = vmatprep.subr.bf16.mxu0 0
    %440 = vmatpush1.bf16.msra.mxu0 %v266
    %441 = vmatprep.subr.bf16.mxu0 0
    %442 = vmatpush1.bf16.msra.mxu0 %v267
    %443 = vmatprep.subr.bf16.mxu0 0
    %444 = vmatpush1.bf16.msra.mxu0 0
    %445 = vmatprep.subr.bf16.mxu0 0
    %446 = vmatpush1.bf16.msra.mxu0 0
    %447 = vmatprep.subr.bf16.mxu0 0
    %448 = vmatpush1.bf16.msra.mxu0 0
    %449 = vmatprep.subr.bf16.mxu0 0
    %450 = vmatpush1.bf16.msra.mxu0 0
    %451 = vmatprep.subr.bf16.mxu0 0
    %452 = vmatpush1.bf16.msra.mxu0 0
    %453 = vmatprep.subr.bf16.mxu0 0
    %454 = vmatpush1.bf16.msra.mxu0 0
    %455 = vmatprep.subr.bf16.mxu0 0
    %456 = vmatpush1.bf16.msra.mxu0 0
    %457 = vmatprep.subr.bf16.mxu0 0
    %458 = vmatpush1.bf16.msra.mxu0 0
    %459 = vmatprep.subr.bf16.mxu0 0
    %460 = vmatpush1.bf16.msra.mxu0 0
    %461 = vmatprep.subr.bf16.mxu0 0
    %462 = vmatpush1.bf16.msra.mxu0 0
    %463 = vmatprep.subr.bf16.mxu0 0
    %464 = vmatpush1.bf16.msra.mxu0 0
    %465 = vmatprep.subr.bf16.mxu0 0
    %466 = vmatpush1.bf16.msra.mxu0 0
    %467 = vmatprep.subr.bf16.mxu0 0
    %468 = vmatpush1.bf16.msra.mxu0 0
    %469 = vmatprep.subr.bf16.mxu0 0
    %470 = vmatpush1.bf16.msra.mxu0 0
    %471 = vmatprep.mubr.bf16.mxu0 0
    %472 = vmatmul.mubr.bf16.gmra.mrb[0].mxu0 %v437
    %v473 = vpop.f32.mrb[0].mxu0
    %v474 = vadd.f32 %v255, %v473
    %v475 = vpop.f32.mrb[0].mxu0
    %v476 = vpop.f32.mrb[0].mxu0
    %v477 = vpop.f32.mrb[0].mxu0
    %478 = vdwg.mxu0
    %v479 = vadd.f32 %v233, %v474
    %v480 = vmul.f32 %v479, 0.5
    %v481 = vtanh.pop %v480
    %v482 = vadd.f32 %v481, 1.0
    %v483 = vmul.f32 %v482, 0.5
    %485 = vrot.lane.b32.xlu0 %v474, 64
    %v486 = vpop.permute.xlu0 %485
    %v488 = vmul.f32 %v483, %v486
    %490 = vrot.lane.b32.xlu0 %v488, 64
    %v491 = vpop.permute.xlu0 %490
    %v493 = vadd.f32 %v233, %v491
    %v494 = vtanh.pop %v493
    %v495 = vsub.f32 1.0, %v483
    %497 = vrot.lane.b32.xlu0 %v494, 96
    %v498 = vpop.permute.xlu0 %497
    %v500 = vmul.f32 %v495, %v498
    %502 = vrot.lane.b32.xlu0 %v434, 32
    %v503 = vpop.permute.xlu0 %502
    %v505 = vmul.f32 %v483, %v503
    %v506 = vadd.f32 %v500, %v505
    %vm507 = vcmp.gt.s32.totalorder %v257, 2
    %v508 = vsel %vm507, 1, 0
    %509 = vset.pattern.permute.xlu0 0
    %510 = vperm.xlu0 %509, %v508
    %v511 = vpop.permute.xlu0 %510
    %vm512 = vcmp.eq.s32.totalorder %v511, 1
    %v513 = vsel %vm512, %v506, %v503
    %v514 = vpack.c.bf16 %v513, %v513
    %516 = vrot.lane.b32.xlu0 %v514, 96
    %v517 = vpop.permute.xlu0 %516
    %v519 = vsel %vm56, %v517, 0
    %521 = vmatprep.subr.bf16.mxu0 0
    %522 = vmatpush1.bf16.msra.mxu0 %v266
    %523 = vmatprep.subr.bf16.mxu0 0
    %524 = vmatpush1.bf16.msra.mxu0 %v267
    %525 = vmatprep.subr.bf16.mxu0 0
    %526 = vmatpush1.bf16.msra.mxu0 0
    %527 = vmatprep.subr.bf16.mxu0 0
    %528 = vmatpush1.bf16.msra.mxu0 0
    %529 = vmatprep.subr.bf16.mxu0 0
    %530 = vmatpush1.bf16.msra.mxu0 0
    %531 = vmatprep.subr.bf16.mxu0 0
    %532 = vmatpush1.bf16.msra.mxu0 0
    %533 = vmatprep.subr.bf16.mxu0 0
    %534 = vmatpush1.bf16.msra.mxu0 0
    %535 = vmatprep.subr.bf16.mxu0 0
    %536 = vmatpush1.bf16.msra.mxu0 0
    %537 = vmatprep.subr.bf16.mxu0 0
    %538 = vmatpush1.bf16.msra.mxu0 0
    %539 = vmatprep.subr.bf16.mxu0 0
    %540 = vmatpush1.bf16.msra.mxu0 0
    %541 = vmatprep.subr.bf16.mxu0 0
    %542 = vmatpush1.bf16.msra.mxu0 0
    %543 = vmatprep.subr.bf16.mxu0 0
    %544 = vmatpush1.bf16.msra.mxu0 0
    %545 = vmatprep.subr.bf16.mxu0 0
    %546 = vmatpush1.bf16.msra.mxu0 0
    %547 = vmatprep.subr.bf16.mxu0 0
    %548 = vmatpush1.bf16.msra.mxu0 0
    %549 = vmatprep.subr.bf16.mxu0 0
    %550 = vmatpush1.bf16.msra.mxu0 0
    %551 = vmatprep.subr.bf16.mxu0 0
    %552 = vmatpush1.bf16.msra.mxu0 0
    %553 = vmatprep.mubr.bf16.mxu0 0
    %554 = vmatmul.mubr.bf16.gmra.mrb[0].mxu0 %v519
    %v555 = vpop.f32.mrb[0].mxu0
    %v556 = vadd.f32 %v255, %v555
    %v557 = vpop.f32.mrb[0].mxu0
    %v558 = vpop.f32.mrb[0].mxu0
    %v559 = vpop.f32.mrb[0].mxu0
    %560 = vdwg.mxu0
    %v562 = vrot.slane %v556, 4
    %v564 = vadd.f32 %v233, %v562
    %v565 = vmul.f32 %v564, 0.5
    %v566 = vtanh.pop %v565
    %v567 = vadd.f32 %v566, 1.0
    %v568 = vmul.f32 %v567, 0.5
    %569 = vrot.lane.b32.xlu0 %v562, 64
    %v570 = vpop.permute.xlu0 %569
    %v572 = vmul.f32 %v568, %v570
    %574 = vrot.lane.b32.xlu0 %v572, 64
    %v575 = vpop.permute.xlu0 %574
    %v577 = vadd.f32 %v233, %v575
    %v578 = vtanh.pop %v577
    %v579 = vsub.f32 1.0, %v568
    %581 = vrot.lane.b32.xlu0 %v578, 96
    %v582 = vpop.permute.xlu0 %581
    %v584 = vmul.f32 %v579, %v582
    %v586 = vrot.slane %v513, 4
    %v588 = vmul.f32 %v568, %v586
    %v589 = vadd.f32 %v584, %v588
    %vm590 = vcmp.gt.s32.totalorder %v257, 3
    %v591 = vsel %vm590, 1, 0
    %592 = vset.pattern.permute.xlu0 0
    %593 = vperm.xlu0 %592, %v591
    %v594 = vpop.permute.xlu0 %593
    %vm595 = vcmp.eq.s32.totalorder %v594, 1
    %v597 = vrot.slane %v589, 4
    %598 = vrot.lane.b32.xlu0 %v597, 96
    %v599 = vpop.permute.xlu0 %598
    %601 = vrot.lane.b32.xlu0 %v513, 96
    %v602 = vpop.permute.xlu0 %601
    %v604 = vsel %vm595, %v599, %v602
    %v605 = vpack.c.bf16 %v604, %v604
    %v607 = vsel %vm56, %v605, 0
    %609 = vmatprep.subr.bf16.mxu0 0
    %610 = vmatpush1.bf16.msra.mxu0 %v266
    %611 = vmatprep.subr.bf16.mxu0 0
    %612 = vmatpush1.bf16.msra.mxu0 %v267
    %613 = vmatprep.subr.bf16.mxu0 0
    %614 = vmatpush1.bf16.msra.mxu0 0
    %615 = vmatprep.subr.bf16.mxu0 0
    %616 = vmatpush1.bf16.msra.mxu0 0
    %617 = vmatprep.subr.bf16.mxu0 0
    %618 = vmatpush1.bf16.msra.mxu0 0
    %619 = vmatprep.subr.bf16.mxu0 0
    %620 = vmatpush1.bf16.msra.mxu0 0
    %621 = vmatprep.subr.bf16.mxu0 0
    %622 = vmatpush1.bf16.msra.mxu0 0
    %623 = vmatprep.subr.bf16.mxu0 0
    %624 = vmatpush1.bf16.msra.mxu0 0
    %625 = vmatprep.subr.bf16.mxu0 0
    %626 = vmatpush1.bf16.msra.mxu0 0
    %627 = vmatprep.subr.bf16.mxu0 0
    %628 = vmatpush1.bf16.msra.mxu0 0
    %629 = vmatprep.subr.bf16.mxu0 0
    %630 = vmatpush1.bf16.msra.mxu0 0
    %631 = vmatprep.subr.bf16.mxu0 0
    %632 = vmatpush1.bf16.msra.mxu0 0
    %633 = vmatprep.subr.bf16.mxu0 0
    %634 = vmatpush1.bf16.msra.mxu0 0
    %635 = vmatprep.subr.bf16.mxu0 0
    %636 = vmatpush1.bf16.msra.mxu0 0
    %637 = vmatprep.subr.bf16.mxu0 0
    %638 = vmatpush1.bf16.msra.mxu0 0
    %639 = vmatprep.subr.bf16.mxu0 0
    %640 = vmatpush1.bf16.msra.mxu0 0
    %641 = vmatprep.mubr.bf16.mxu0 0
    %642 = vmatmul.mubr.bf16.gmra.mrb[0].mxu0 %v607
    %v643 = vpop.f32.mrb[0].mxu0
    %v644 = vadd.f32 %v255, %v643
    %v645 = vpop.f32.mrb[0].mxu0
    %v646 = vpop.f32.mrb[0].mxu0
    %v647 = vpop.f32.mrb[0].mxu0
    %648 = vdwg.mxu0
    %v649 = vadd.f32 %v238, %v644
    %v650 = vmul.f32 %v649, 0.5
    %v651 = vtanh.pop %v650
    %v652 = vadd.f32 %v651, 1.0
    %v653 = vmul.f32 %v652, 0.5
    %655 = vrot.lane.b32.xlu0 %v644, 64
    %v656 = vpop.permute.xlu0 %655
    %v658 = vmul.f32 %v653, %v656
    %660 = vrot.lane.b32.xlu0 %v658, 64
    %v661 = vpop.permute.xlu0 %660
    %v663 = vadd.f32 %v238, %v661
    %v664 = vtanh.pop %v663
    %v665 = vsub.f32 1.0, %v653
    %667 = vrot.lane.b32.xlu0 %v664, 96
    %v668 = vpop.permute.xlu0 %667
    %v670 = vmul.f32 %v665, %v668
    %672 = vrot.lane.b32.xlu0 %v604, 32
    %v673 = vpop.permute.xlu0 %672
    %v675 = vmul.f32 %v653, %v673
    %v676 = vadd.f32 %v670, %v675
    %vm677 = vcmp.gt.s32.totalorder %v257, 4
    %v678 = vsel %vm677, 1, 0
    %679 = vset.pattern.permute.xlu0 0
    %680 = vperm.xlu0 %679, %v678
    %v681 = vpop.permute.xlu0 %680
    %vm682 = vcmp.eq.s32.totalorder %v681, 1
    %v683 = vsel %vm682, %v676, %v673
    %v684 = vpack.c.bf16 %v683, %v683
    %686 = vrot.lane.b32.xlu0 %v684, 96
    %v687 = vpop.permute.xlu0 %686
    %v689 = vsel %vm56, %v687, 0
    %691 = vmatprep.subr.bf16.mxu0 0
    %692 = vmatpush1.bf16.msra.mxu0 %v266
    %693 = vmatprep.subr.bf16.mxu0 0
    %694 = vmatpush1.bf16.msra.mxu0 %v267
    %695 = vmatprep.subr.bf16.mxu0 0
    %696 = vmatpush1.bf16.msra.mxu0 0
    %697 = vmatprep.subr.bf16.mxu0 0
    %698 = vmatpush1.bf16.msra.mxu0 0
    %699 = vmatprep.subr.bf16.mxu0 0
    %700 = vmatpush1.bf16.msra.mxu0 0
    %701 = vmatprep.subr.bf16.mxu0 0
    %702 = vmatpush1.bf16.msra.mxu0 0
    %703 = vmatprep.subr.bf16.mxu0 0
    %704 = vmatpush1.bf16.msra.mxu0 0
    %705 = vmatprep.subr.bf16.mxu0 0
    %706 = vmatpush1.bf16.msra.mxu0 0
    %707 = vmatprep.subr.bf16.mxu0 0
    %708 = vmatpush1.bf16.msra.mxu0 0
    %709 = vmatprep.subr.bf16.mxu0 0
    %710 = vmatpush1.bf16.msra.mxu0 0
    %711 = vmatprep.subr.bf16.mxu0 0
    %712 = vmatpush1.bf16.msra.mxu0 0
    %713 = vmatprep.subr.bf16.mxu0 0
    %714 = vmatpush1.bf16.msra.mxu0 0
    %715 = vmatprep.subr.bf16.mxu0 0
    %716 = vmatpush1.bf16.msra.mxu0 0
    %717 = vmatprep.subr.bf16.mxu0 0
    %718 = vmatpush1.bf16.msra.mxu0 0
    %719 = vmatprep.subr.bf16.mxu0 0
    %720 = vmatpush1.bf16.msra.mxu0 0
    %721 = vmatprep.subr.bf16.mxu0 0
    %722 = vmatpush1.bf16.msra.mxu0 0
    %723 = vmatprep.mubr.bf16.mxu0 0
    %724 = vmatmul.mubr.bf16.gmra.mrb[0].mxu0 %v689
    %v725 = vpop.f32.mrb[0].mxu0
    %v726 = vadd.f32 %v255, %v725
    %v727 = vpop.f32.mrb[0].mxu0
    %v728 = vpop.f32.mrb[0].mxu0
    %v729 = vpop.f32.mrb[0].mxu0
    %730 = vdwg.mxu0
    %v732 = vrot.slane %v726, 4
    %v734 = vadd.f32 %v238, %v732
    %v735 = vmul.f32 %v734, 0.5
    %v736 = vtanh.pop %v735
    %v737 = vadd.f32 %v736, 1.0
    %v738 = vmul.f32 %v737, 0.5
    %739 = vrot.lane.b32.xlu0 %v732, 64
    %v740 = vpop.permute.xlu0 %739
    %v742 = vmul.f32 %v738, %v740
    %744 = vrot.lane.b32.xlu0 %v742, 64
    %v745 = vpop.permute.xlu0 %744
    %v747 = vadd.f32 %v238, %v745
    %v748 = vtanh.pop %v747
    %v749 = vsub.f32 1.0, %v738
    %751 = vrot.lane.b32.xlu0 %v748, 96
    %v752 = vpop.permute.xlu0 %751
    %v754 = vmul.f32 %v749, %v752
    %v756 = vrot.slane %v683, 4
    %v758 = vmul.f32 %v738, %v756
    %v759 = vadd.f32 %v754, %v758
    %vm760 = vcmp.gt.s32.totalorder %v257, 5
    %v761 = vsel %vm760, 1, 0
    %762 = vset.pattern.permute.xlu0 0
    %763 = vperm.xlu0 %762, %v761
    %v764 = vpop.permute.xlu0 %763
    %vm765 = vcmp.eq.s32.totalorder %v764, 1
    %v767 = vrot.slane %v759, 4
    %768 = vrot.lane.b32.xlu0 %v767, 96
    %v769 = vpop.permute.xlu0 %768
    %771 = vrot.lane.b32.xlu0 %v683, 96
    %v772 = vpop.permute.xlu0 %771
    %v774 = vsel %vm765, %v769, %v772
    %v775 = vpack.c.bf16 %v774, %v774
    %v777 = vsel %vm56, %v775, 0
    %779 = vmatprep.subr.bf16.mxu0 0
    %780 = vmatpush1.bf16.msra.mxu0 %v266
    %781 = vmatprep.subr.bf16.mxu0 0
    %782 = vmatpush1.bf16.msra.mxu0 %v267
    %783 = vmatprep.subr.bf16.mxu0 0
    %784 = vmatpush1.bf16.msra.mxu0 0
    %785 = vmatprep.subr.bf16.mxu0 0
    %786 = vmatpush1.bf16.msra.mxu0 0
    %787 = vmatprep.subr.bf16.mxu0 0
    %788 = vmatpush1.bf16.msra.mxu0 0
    %789 = vmatprep.subr.bf16.mxu0 0
    %790 = vmatpush1.bf16.msra.mxu0 0
    %791 = vmatprep.subr.bf16.mxu0 0
    %792 = vmatpush1.bf16.msra.mxu0 0
    %793 = vmatprep.subr.bf16.mxu0 0
    %794 = vmatpush1.bf16.msra.mxu0 0
    %795 = vmatprep.subr.bf16.mxu0 0
    %796 = vmatpush1.bf16.msra.mxu0 0
    %797 = vmatprep.subr.bf16.mxu0 0
    %798 = vmatpush1.bf16.msra.mxu0 0
    %799 = vmatprep.subr.bf16.mxu0 0
    %800 = vmatpush1.bf16.msra.mxu0 0
    %801 = vmatprep.subr.bf16.mxu0 0
    %802 = vmatpush1.bf16.msra.mxu0 0
    %803 = vmatprep.subr.bf16.mxu0 0
    %804 = vmatpush1.bf16.msra.mxu0 0
    %805 = vmatprep.subr.bf16.mxu0 0
    %806 = vmatpush1.bf16.msra.mxu0 0
    %807 = vmatprep.subr.bf16.mxu0 0
    %808 = vmatpush1.bf16.msra.mxu0 0
    %809 = vmatprep.subr.bf16.mxu0 0
    %810 = vmatpush1.bf16.msra.mxu0 0
    %811 = vmatprep.mubr.bf16.mxu0 0
    %812 = vmatmul.mubr.bf16.gmra.mrb[0].mxu0 %v777
    %v813 = vpop.f32.mrb[0].mxu0
    %v814 = vadd.f32 %v255, %v813
    %v815 = vpop.f32.mrb[0].mxu0
    %v816 = vpop.f32.mrb[0].mxu0
    %v817 = vpop.f32.mrb[0].mxu0
    %818 = vdwg.mxu0
    %v819 = vadd.f32 %v243, %v814
    %v820 = vmul.f32 %v819, 0.5
    %v821 = vtanh.pop %v820
    %v822 = vadd.f32 %v821, 1.0
    %v823 = vmul.f32 %v822, 0.5
    %825 = vrot.lane.b32.xlu0 %v814, 64
    %v826 = vpop.permute.xlu0 %825
    %v828 = vmul.f32 %v823, %v826
    %830 = vrot.lane.b32.xlu0 %v828, 64
    %v831 = vpop.permute.xlu0 %830
    %v833 = vadd.f32 %v243, %v831
    %v834 = vtanh.pop %v833
    %v835 = vsub.f32 1.0, %v823
    %837 = vrot.lane.b32.xlu0 %v834, 96
    %v838 = vpop.permute.xlu0 %837
    %v840 = vmul.f32 %v835, %v838
    %842 = vrot.lane.b32.xlu0 %v774, 32
    %v843 = vpop.permute.xlu0 %842
    %v845 = vmul.f32 %v823, %v843
    %v846 = vadd.f32 %v840, %v845
    %vm847 = vcmp.gt.s32.totalorder %v257, 6
    %v848 = vsel %vm847, 1, 0
    %849 = vset.pattern.permute.xlu0 0
    %850 = vperm.xlu0 %849, %v848
    %v851 = vpop.permute.xlu0 %850
    %vm852 = vcmp.eq.s32.totalorder %v851, 1
    %v853 = vsel %vm852, %v846, %v843
    %v854 = vpack.c.bf16 %v853, %v853
    %856 = vrot.lane.b32.xlu0 %v854, 96
    %v857 = vpop.permute.xlu0 %856
    %v859 = vsel %vm56, %v857, 0
    %861 = vmatprep.subr.bf16.mxu0 0
    %862 = vmatpush1.bf16.msra.mxu0 %v266
    %863 = vmatprep.subr.bf16.mxu0 0
    %864 = vmatpush1.bf16.msra.mxu0 %v267
    %865 = vmatprep.subr.bf16.mxu0 0
    %866 = vmatpush1.bf16.msra.mxu0 0
    %867 = vmatprep.subr.bf16.mxu0 0
    %868 = vmatpush1.bf16.msra.mxu0 0
    %869 = vmatprep.subr.bf16.mxu0 0
    %870 = vmatpush1.bf16.msra.mxu0 0
    %871 = vmatprep.subr.bf16.mxu0 0
    %872 = vmatpush1.bf16.msra.mxu0 0
    %873 = vmatprep.subr.bf16.mxu0 0
    %874 = vmatpush1.bf16.msra.mxu0 0
    %875 = vmatprep.subr.bf16.mxu0 0
    %876 = vmatpush1.bf16.msra.mxu0 0
    %877 = vmatprep.subr.bf16.mxu0 0
    %878 = vmatpush1.bf16.msra.mxu0 0
    %879 = vmatprep.subr.bf16.mxu0 0
    %880 = vmatpush1.bf16.msra.mxu0 0
    %881 = vmatprep.subr.bf16.mxu0 0
    %882 = vmatpush1.bf16.msra.mxu0 0
    %883 = vmatprep.subr.bf16.mxu0 0
    %884 = vmatpush1.bf16.msra.mxu0 0
    %885 = vmatprep.subr.bf16.mxu0 0
    %886 = vmatpush1.bf16.msra.mxu0 0
    %887 = vmatprep.subr.bf16.mxu0 0
    %888 = vmatpush1.bf16.msra.mxu0 0
    %889 = vmatprep.subr.bf16.mxu0 0
    %890 = vmatpush1.bf16.msra.mxu0 0
    %891 = vmatprep.subr.bf16.mxu0 0
    %892 = vmatpush1.bf16.msra.mxu0 0
    %893 = vmatprep.mubr.bf16.mxu0 0
    %894 = vmatmul.mubr.bf16.gmra.mrb[0].mxu0 %v859
    %v895 = vpop.f32.mrb[0].mxu0
    %v896 = vadd.f32 %v255, %v895
    %v897 = vpop.f32.mrb[0].mxu0
    %v898 = vpop.f32.mrb[0].mxu0
    %v899 = vpop.f32.mrb[0].mxu0
    %900 = vdwg.mxu0
    %v902 = vrot.slane %v896, 4
    %v904 = vadd.f32 %v243, %v902
    %v905 = vmul.f32 %v904, 0.5
    %v906 = vtanh.pop %v905
    %v907 = vadd.f32 %v906, 1.0
    %v908 = vmul.f32 %v907, 0.5
    %909 = vrot.lane.b32.xlu0 %v902, 64
    %v910 = vpop.permute.xlu0 %909
    %v912 = vmul.f32 %v908, %v910
    %914 = vrot.lane.b32.xlu0 %v912, 64
    %v915 = vpop.permute.xlu0 %914
    %v917 = vadd.f32 %v243, %v915
    %v918 = vtanh.pop %v917
    %v919 = vsub.f32 1.0, %v908
    %921 = vrot.lane.b32.xlu0 %v918, 96
    %v922 = vpop.permute.xlu0 %921
    %v924 = vmul.f32 %v919, %v922
    %v926 = vrot.slane %v853, 4
    %v928 = vmul.f32 %v908, %v926
    %v929 = vadd.f32 %v924, %v928
    %vm930 = vcmp.gt.s32.totalorder %v257, 7
    %v931 = vsel %vm930, 1, 0
    %932 = vset.pattern.permute.xlu0 0
    %933 = vperm.xlu0 %932, %v931
    %v934 = vpop.permute.xlu0 %933
    %vm935 = vcmp.eq.s32.totalorder %v934, 1
    %v937 = vrot.slane %v929, 4
    %938 = vrot.lane.b32.xlu0 %v937, 96
    %v939 = vpop.permute.xlu0 %938
    %941 = vrot.lane.b32.xlu0 %v853, 96
    %v942 = vpop.permute.xlu0 %941
    %v944 = vsel %vm935, %v939, %v942
    %v945 = vmul.f32 %v944, %v944
    %v946 = vsel %vm101, %v945, 0.0
    %947 = vadd.xlane.f32.xlu0 %v946
    %v948 = vpop.xlane.xlu0 %947
    %v949 = vrsqrt.pop %v948
    %v950 = vmul.f32 %v948, %v949
    %vm951 = vcmp.eq.f32.partialorder %v948, inf
    %v952 = vsel %vm951, %v948, %v950
    %vm953 = vcmp.eq.f32.partialorder %v948, 0.0
    %v954 = vand.u32 %v948, 2147483648
    %v955 = vsel %vm953, %v954, %v952
    %v956 = vadd.f32 %v955, 1e-07
    %v957 = vrcp.pop %v956
    %v958 = vmul.f32 %v944, %v957
    %v959 = vpack.c.bf16 %v114, %v114
    %v960 = vpack.c.bf16 %v958, %v958
    %v962 = vsel %vm56, %v959, 0
    %v965 = vsel %vm56, %v960, 0
    %967 = vmatprep.subr.bf16.mxu0 0
    %968 = vmatpush1.bf16.xpose.msra.mxu0 %v965
    %969 = vmatprep.subr.bf16.mxu0 0
    %970 = vmatpush1.bf16.xpose.msra.mxu0 0
    %971 = vmatprep.subr.bf16.mxu0 0
    %972 = vmatpush1.bf16.xpose.msra.mxu0 0
    %973 = vmatprep.subr.bf16.mxu0 0
    %974 = vmatpush1.bf16.xpose.msra.mxu0 0
    %975 = vmatprep.subr.bf16.mxu0 0
    %976 = vmatpush1.bf16.xpose.msra.mxu0 0
    %977 = vmatprep.subr.bf16.mxu0 0
    %978 = vmatpush1.bf16.xpose.msra.mxu0 0
    %979 = vmatprep.subr.bf16.mxu0 0
    %980 = vmatpush1.bf16.xpose.msra.mxu0 0
    %981 = vmatprep.subr.bf16.mxu0 0
    %982 = vmatpush1.bf16.xpose.msra.mxu0 0
    %983 = vmatprep.subr.bf16.mxu0 0
    %984 = vmatpush1.bf16.xpose.msra.mxu0 0
    %985 = vmatprep.subr.bf16.mxu0 0
    %986 = vmatpush1.bf16.xpose.msra.mxu0 0
    %987 = vmatprep.subr.bf16.mxu0 0
    %988 = vmatpush1.bf16.xpose.msra.mxu0 0
    %989 = vmatprep.subr.bf16.mxu0 0
    %990 = vmatpush1.bf16.xpose.msra.mxu0 0
    %991 = vmatprep.subr.bf16.mxu0 0
    %992 = vmatpush1.bf16.xpose.msra.mxu0 0
    %993 = vmatprep.subr.bf16.mxu0 0
    %994 = vmatpush1.bf16.xpose.msra.mxu0 0
    %995 = vmatprep.subr.bf16.mxu0 0
    %996 = vmatpush1.bf16.xpose.msra.mxu0 0
    %997 = vmatprep.subr.bf16.mxu0 0
    %998 = vmatpush1.bf16.xpose.msra.mxu0 0
    %999 = vmatprep.mubr.bf16.mxu0 0
    %1000 = vmatmul.mubr.bf16.gmra.mrb[0].mxu0 %v962
    %v1001 = vpop.f32.mrb[0].mxu0
    %v1002 = vadd.f32 0.0, %v1001
    %v1003 = vpop.f32.mrb[0].mxu0
    %v1004 = vpop.f32.mrb[0].mxu0
    %v1005 = vpop.f32.mrb[0].mxu0
    %1006 = vdwg.mxu0
    %v1007 = vlaneseq
    %v1008 = vshrl.u32 %v1007, 7
    %vm1009 = vcmp.eq.s32.totalorder %v1008, %v120
    %v1010 = vsel %vm1009, %v1002, 0.0
    %vm1011 = vcmask 27648
    %v1012 = vsel %vm1011, %v1010, 0.0
    %1013 = vadd.xlane.f32.xlu0 %v1012
    %v1014 = vpop.xlane.xlu0 %1013
    %v1015 = vrot.slane %v1012, 4
    %v1016 = vadd.f32 %v1012, %v1015
    %v1017 = vrot.slane %v1016, 2
    %v1018 = vadd.f32 %v1016, %v1017
    %v1019 = vrot.slane %v1018, 1
    %v1020 = vadd.f32 %v1018, %v1019
    %v1021 = vadd.f32 %v1002, 0.2
    %v1022 = vsub.f32 %v1021, %v1014
    %v1023 = vmax.f32 %v1022, 0.0
    %v1024 = vsel %vm1009, 0.0, %v1023
    %v1025 = vsub.f32 %v1021, %v1020
    %v1026 = vmax.f32 %v1025, 0.0
    %v1027 = vsel %vm1009, 0.0, %v1026
    %v1028 = vsel %vm1011, %v1024, 0.0
    %1029 = vadd.xlane.f32.xlu0 %v1028
    %v1030 = vpop.xlane.xlu0 %1029
    %v1031 = vrot.slane %v1030, 4
    %v1032 = vadd.f32 %v1030, %v1031
    %v1033 = vrot.slane %v1032, 2
    %v1034 = vadd.f32 %v1032, %v1033
    %v1035 = vrot.slane %v1034, 1
    %v1036 = vadd.f32 %v1034, %v1035
    %s1037 = vtos %v1036
    %v1038 = vstv %s1037
    %v1039 = vsel %vm1011, %v1027, 0.0
    %1040 = vadd.xlane.f32.xlu0 %v1039
    %v1041 = vpop.xlane.xlu0 %1040
    %v1042 = vrot.slane %v1041, 4
    %v1043 = vadd.f32 %v1041, %v1042
    %v1044 = vrot.slane %v1043, 2
    %v1045 = vadd.f32 %v1043, %v1044
    %v1046 = vrot.slane %v1045, 1
    %v1047 = vadd.f32 %v1045, %v1046
    %s1048 = vtos %v1047
    %v1049 = vstv %s1048
    %v1050 = vadd.f32 %v1038, %v1049
    %v1051 = vmul.f32 %v1050, 0.25
    %vm1052 = vcmask 0
    %1053 = vst.msk [vmem:[#allocation2] sm:$0x1] %vm1052, %v1051
    // Predicated region
    $region34: #{vsefc_forward.1} parent=1 // pred_check
      _
    $region35: #{vsefc_forward.1} parent=1 // pred_check_branch
      %1055 = sbr.rel (0) target = $region37
    $region36: #{vsefc_forward.1} parent=1 // pred_region
      %s1057 = ssub.s32 16, 16
      %1058 = vsyncadd [#allocation3], %s1057
      %s1060 = sshll.u32 [#allocation2], 4
      %s1061 = int_to_ptr.vmem [resolvable:$true] %s1060
      %1063 = dma.vmem_to_hbm [thread:$0]  %s1061, 16, %s8, [#allocation3]
    $region37: #{vsefc_forward.1} parent=1 // pred_fallthru
      _
    // Predicated region
    $region38: #{vsefc_forward.1} parent=1 // pred_check
      _
    $region39: #{vsefc_forward.1} parent=1 // pred_check_branch
      %1065 = sbr.rel (0) target = $region41
    $region40: #{vsefc_forward.1} parent=1 // pred_region
      %1066 = dma.done [#allocation3], 16
    $region41: #{vsefc_forward.1} parent=1 // pred_fallthru
      _
    %1067 = vsyncpa [#allocation3], 1

</llo_original>
